<compile_context>
chip_gen: v5e
topology: v5e:2x2
jax: 0.10.0
libtpu: 0.0.40
codegen_flags: <defaults>
</compile_context>

<pallas_src>
import numpy as np
import jax
import jax.numpy as jnp
from jax.experimental import pallas as pl
from jax.experimental.pallas import tpu as pltpu


# ----------------------------- Pallas kernel --------------------------------
def lstm_model_kernel(gx0_ref,    # (T, Bp, 4H)  precomputed x @ W_ih0^T + b0 (time-major)
                      whh0_ref,   # (H, 4H)      layer-0 recurrent weight (pre-transposed)
                      w1_ref,     # (2H, 4H)     layer-1 fused [W_ih1^T ; W_hh1^T]
                      b1_ref,     # (1, 4H)
                      wlin_ref,   # (1, H)       Linear(H, 1) weight row
                      blin_ref,   # (1, 1)
                      out_ref):   # (Bp, 1)
    T, Bp, _ = gx0_ref.shape
    H = whh0_ref.shape[0]

    whh0 = whh0_ref[...]
    w1 = w1_ref[...]
    b1 = b1_ref[...]
    wlin = wlin_ref[...]
    blin = blin_ref[...]

    def gate_act(gates):
        # One vreg-wide sigmoid + one vreg-wide tanh (gates is (Bp, 4H) = (8, 128)),
        # then slice i/f/o and g out of the activated vregs.  Gate order [i,f,g,o].
        sig = jax.nn.sigmoid(gates)
        th = jnp.tanh(gates)
        i = sig[:, 0 * H:1 * H]
        f = sig[:, 1 * H:2 * H]
        g = th[:, 2 * H:3 * H]
        o = sig[:, 3 * H:4 * H]
        return i, f, g, o

    def step(t, carry):
        h0, c0, h1, c1, acc = carry

        # ---- layer 0: input projection hoisted; only the recurrent matmul remains
        g0 = gx0_ref[t] + jnp.dot(h0, whh0, preferred_element_type=jnp.float32)
        i0, f0, gg0, o0 = gate_act(g0)
        c0 = f0 * c0 + i0 * gg0
        h0 = o0 * jnp.tanh(c0)

        # ---- layer 1: single fused matmul over [h0, h1]
        hcat = jnp.concatenate([h0, h1], axis=-1)                     # (Bp, 2H)
        g1 = jnp.dot(hcat, w1, preferred_element_type=jnp.float32) + b1
        i1, f1, gg1, o1 = gate_act(g1)
        c1 = f1 * c1 + i1 * gg1
        h1 = o1 * jnp.tanh(c1)

        # ---- head: relu -> Linear(H,1) as VPU multiply + lane reduce -> relu
        y = jnp.maximum(h1, 0.0)
        y = jnp.sum(y * wlin, axis=-1, keepdims=True) + blin          # (Bp, 1)
        y = jnp.maximum(y, 0.0)
        return (h0, c0, h1, c1, acc + y)

    z = jnp.zeros((Bp, H), jnp.float32)
    acc0 = jnp.zeros((Bp, 1), jnp.float32)
    carry = jax.lax.fori_loop(0, T, step, (z, z, z, z, acc0), unroll=True)

    # AdaptiveAvgPool1d(1) over time == mean over T.
    out_ref[...] = carry[4] * (1.0 / T)


# ------------------------------ wrapper --------------------------------------
def lstm_model_forward(x, params):
    """x: (B, T, I) batch-first float32, returns (B, 1) float32."""
    B, T, I = x.shape
    Bp = ((B + 7) // 8) * 8                     # pad batch to 8-sublane granularity

    x_p = jnp.zeros((Bp, T, I), jnp.float32).at[:B].set(x.astype(jnp.float32))

    # Hoisted layer-0 input projection: one well-shaped matmul outside the serial
    # recurrence, laid out time-major (T, Bp, 4H) for per-step indexing in the kernel.
    gx0 = jnp.einsum("bti,ih->tbh", x_p, params["wih0_t"]) + params["b0"]

    vmem = pl.BlockSpec(memory_space=pltpu.MemorySpace.VMEM)
    out = pl.pallas_call(
        lstm_model_kernel,
        out_shape=jax.ShapeDtypeStruct((Bp, 1), jnp.float32),
        in_specs=[vmem] * 6,
        out_specs=vmem,
    )(gx0, params["whh0_t"], params["w1_cat"], params["b1"],
      params["wlin_row"], params["blin"])
    return out[:B]                               # drop padded (garbage) batch rows


# ---------------------------- parameter init ---------------------------------
def init_params(key, input_dim, hidden_dim, output_dim):
    H, I = hidden_dim, input_dim
    k = 1.0 / np.sqrt(H)
    ks = jax.random.split(key, 10)

    def u(rng, shape):
        return jax.random.uniform(rng, shape, jnp.float32, -k, k)

    # PyTorch LSTM weights: weight_ih_l* (4H, in), weight_hh_l* (4H, H), biases (4H,)
    wih0 = u(ks[0], (4 * H, I))
    whh0 = u(ks[1], (4 * H, H))
    b0 = u(ks[2], (4 * H,)) + u(ks[3], (4 * H,))          # b_ih + b_hh folded
    wih1 = u(ks[4], (4 * H, H))
    whh1 = u(ks[5], (4 * H, H))
    b1 = u(ks[6], (4 * H,)) + u(ks[7], (4 * H,))
    wlin = u(ks[8], (output_dim, H))                      # Linear(H, 1)
    blin = u(ks[9], (output_dim,))

    return {
        "wih0_t": wih0.T,                                 # (I, 4H)
        "whh0_t": whh0.T,                                 # (H, 4H)
        "b0": b0.reshape(1, 4 * H),
        # layer-1 input + recurrent weights fused on the host: (2H, 4H)
        "w1_cat": jnp.concatenate([wih1.T, whh1.T], axis=0),
        "b1": b1.reshape(1, 4 * H),
        "wlin_row": wlin,                                 # (1, H)
        "blin": blin.reshape(1, output_dim),              # (1, 1)
    }


# -------------------------- pure-JAX reference --------------------------------
def reference_forward(x, p):
    B, T, I = x.shape
    H = p["whh0_t"].shape[0]
    wih1_t, whh1_t = p["w1_cat"][:H], p["w1_cat"][H:]

    def cell(x_in, h, c, wih, whh, b):
        g = x_in @ wih + h @ whh + b
        i = jax.nn.sigmoid(g[:, :H])
        f = jax.nn.sigmoid(g[:, H:2 * H])
        gg = jnp.tanh(g[:, 2 * H:3 * H])
        o = jax.nn.sigmoid(g[:, 3 * H:])
        c = f * c + i * gg
        h = o * jnp.tanh(c)
        return h, c

    h0 = c0 = h1 = c1 = jnp.zeros((B, H), jnp.float32)
    ys = []
    for t in range(T):
        h0, c0 = cell(x[:, t], h0, c0, p["wih0_t"], p["whh0_t"], p["b0"])
        h1, c1 = cell(h0, h1, c1, wih1_t, whh1_t, p["b1"])
        y = jnp.maximum(h1, 0.0)
        y = jnp.maximum(y @ p["wlin_row"].T + p["blin"], 0.0)     # (B, 1)
        ys.append(y)
    y = jnp.squeeze(jnp.stack(ys, axis=1))       # (B, T)  (B>1, T>1 in this test)
    return jnp.mean(y, axis=-1, keepdims=True)   # (B, 1)


if __name__ == "__main__":
    # Small shapes consistent with the module: batch=2, seq=8, input_dim=26, hidden=32
    B, T, INPUT_DIM, HIDDEN_DIM, OUTPUT_DIM = 2, 8, 26, 32, 1

    key = jax.random.PRNGKey(0)
    k_x, k_p = jax.random.split(key)
    x = jax.random.normal(k_x, (B, T, INPUT_DIM), jnp.float32)
    params = init_params(k_p, INPUT_DIM, HIDDEN_DIM, OUTPUT_DIM)

    fwd = jax.jit(lstm_model_forward)
    out = jax.block_until_ready(fwd(x, params))

    ref = reference_forward(x, params)
    np.testing.assert_allclose(np.asarray(out), np.asarray(ref), rtol=1e-5, atol=1e-5)

    print("KERNEL_OK")
</pallas_src>

<mosaic_0001>
module attributes {stable_mosaic.version = 11 : i64} {
  func.func @lstm_model_kernel(%arg0: memref<8x8x128xf32, #tpu.memory_space<vmem>>, %arg1: memref<32x128xf32, #tpu.memory_space<vmem>>, %arg2: memref<64x128xf32, #tpu.memory_space<vmem>>, %arg3: memref<1x128xf32, #tpu.memory_space<vmem>>, %arg4: memref<1x32xf32, #tpu.memory_space<vmem>>, %arg5: memref<1x1xf32, #tpu.memory_space<vmem>>, %arg6: memref<8x1xf32, #tpu.memory_space<vmem>>) attributes {dimension_semantics = [], scalar_prefetch = 0 : i64, scratch_operands = 0 : i64, tpu.core_type = #tpu.core_type<tc>} {
    %c0 = arith.constant 0 : index
    %c0_0 = arith.constant 0 : index
    %0 = vector.load %arg1[%c0, %c0_0] : memref<32x128xf32, #tpu.memory_space<vmem>>, vector<32x128xf32>
    %c0_1 = arith.constant 0 : index
    %c0_2 = arith.constant 0 : index
    %1 = vector.load %arg2[%c0_1, %c0_2] : memref<64x128xf32, #tpu.memory_space<vmem>>, vector<64x128xf32>
    %c0_3 = arith.constant 0 : index
    %c0_4 = arith.constant 0 : index
    %2 = vector.load %arg3[%c0_3, %c0_4] : memref<1x128xf32, #tpu.memory_space<vmem>>, vector<1x128xf32>
    %c0_5 = arith.constant 0 : index
    %c0_6 = arith.constant 0 : index
    %3 = vector.load %arg4[%c0_5, %c0_6] : memref<1x32xf32, #tpu.memory_space<vmem>>, vector<1x32xf32>
    %c0_7 = arith.constant 0 : index
    %c0_8 = arith.constant 0 : index
    %4 = vector.load %arg5[%c0_7, %c0_8] : memref<1x1xf32, #tpu.memory_space<vmem>>, vector<1x1xf32>
    %cst = arith.constant 0.000000e+00 : f32
    %5 = vector.broadcast %cst : f32 to vector<8x32xf32>
    %cst_9 = arith.constant 0.000000e+00 : f32
    %6 = vector.broadcast %cst_9 : f32 to vector<8x1xf32>
    %c0_i32 = arith.constant 0 : i32
    %7 = arith.index_cast %c0_i32 : i32 to index
    %c0_10 = arith.constant 0 : index
    %c0_11 = arith.constant 0 : index
    %8 = vector.load %arg0[%7, %c0_10, %c0_11] : memref<8x8x128xf32, #tpu.memory_space<vmem>>, vector<1x8x128xf32>
    %9 = vector.shape_cast %8 : vector<1x8x128xf32> to vector<8x128xf32>
    %cst_12 = arith.constant dense<0.000000e+00> : vector<8x128xf32>
    %10 = tpu.matmul %5, %0, %cst_12 {dimension_numbers = #tpu.dot_dimension_numbers<[1], [0], [0], [1], [0, 0, 1, 1], [], []>} : vector<8x32xf32>, vector<32x128xf32>, vector<8x128xf32> -> vector<8x128xf32>
    %11 = arith.addf %9, %10 : vector<8x128xf32>
    %12 = arith.negf %11 : vector<8x128xf32>
    %13 = math.exp %12 : vector<8x128xf32>
    %cst_13 = arith.constant 1.000000e+00 : f32
    %14 = vector.broadcast %cst_13 : f32 to vector<8x128xf32>
    %15 = arith.addf %14, %13 : vector<8x128xf32>
    %16 = arith.divf %14, %15 : vector<8x128xf32>
    %17 = math.tanh %11 : vector<8x128xf32>
    %18 = vector.extract_strided_slice %16 {offsets = [0, 0], sizes = [8, 32], strides = [1, 1]} : vector<8x128xf32> to vector<8x32xf32>
    %19 = vector.extract_strided_slice %16 {offsets = [0, 32], sizes = [8, 32], strides = [1, 1]} : vector<8x128xf32> to vector<8x32xf32>
    %20 = vector.extract_strided_slice %17 {offsets = [0, 64], sizes = [8, 32], strides = [1, 1]} : vector<8x128xf32> to vector<8x32xf32>
    %21 = vector.extract_strided_slice %16 {offsets = [0, 96], sizes = [8, 32], strides = [1, 1]} : vector<8x128xf32> to vector<8x32xf32>
    %22 = arith.mulf %19, %5 : vector<8x32xf32>
    %23 = arith.mulf %18, %20 : vector<8x32xf32>
    %24 = arith.addf %22, %23 : vector<8x32xf32>
    %25 = math.tanh %24 : vector<8x32xf32>
    %26 = arith.mulf %21, %25 : vector<8x32xf32>
    %27 = tpu.concatenate %26, %5 in 1 : vector<8x32xf32>, vector<8x32xf32> -> vector<8x64xf32>
    %cst_14 = arith.constant dense<0.000000e+00> : vector<8x128xf32>
    %28 = tpu.matmul %27, %1, %cst_14 {dimension_numbers = #tpu.dot_dimension_numbers<[1], [0], [0], [1], [0, 0, 1, 1], [], []>} : vector<8x64xf32>, vector<64x128xf32>, vector<8x128xf32> -> vector<8x128xf32>
    %29 = vector.broadcast %2 : vector<1x128xf32> to vector<8x128xf32>
    %30 = arith.addf %28, %29 : vector<8x128xf32>
    %31 = arith.negf %30 : vector<8x128xf32>
    %32 = math.exp %31 : vector<8x128xf32>
    %cst_15 = arith.constant 1.000000e+00 : f32
    %33 = vector.broadcast %cst_15 : f32 to vector<8x128xf32>
    %34 = arith.addf %33, %32 : vector<8x128xf32>
    %35 = arith.divf %33, %34 : vector<8x128xf32>
    %36 = math.tanh %30 : vector<8x128xf32>
    %37 = vector.extract_strided_slice %35 {offsets = [0, 0], sizes = [8, 32], strides = [1, 1]} : vector<8x128xf32> to vector<8x32xf32>
    %38 = vector.extract_strided_slice %35 {offsets = [0, 32], sizes = [8, 32], strides = [1, 1]} : vector<8x128xf32> to vector<8x32xf32>
    %39 = vector.extract_strided_slice %36 {offsets = [0, 64], sizes = [8, 32], strides = [1, 1]} : vector<8x128xf32> to vector<8x32xf32>
    %40 = vector.extract_strided_slice %35 {offsets = [0, 96], sizes = [8, 32], strides = [1, 1]} : vector<8x128xf32> to vector<8x32xf32>
    %41 = arith.mulf %38, %5 : vector<8x32xf32>
    %42 = arith.mulf %37, %39 : vector<8x32xf32>
    %43 = arith.addf %41, %42 : vector<8x32xf32>
    %44 = math.tanh %43 : vector<8x32xf32>
    %45 = arith.mulf %40, %44 : vector<8x32xf32>
    %cst_16 = arith.constant 0.000000e+00 : f32
    %46 = vector.broadcast %cst_16 : f32 to vector<8x32xf32>
    %47 = arith.maximumf %45, %46 : vector<8x32xf32>
    %48 = vector.broadcast %3 : vector<1x32xf32> to vector<8x32xf32>
    %49 = arith.mulf %47, %48 : vector<8x32xf32>
    %cst_17 = arith.constant dense<0.000000e+00> : vector<8xf32>
    %50 = vector.multi_reduction <add>, %49, %cst_17 [1] : vector<8x32xf32> to vector<8xf32>
    %51 = vector.shape_cast %50 : vector<8xf32> to vector<8x1xf32>
    %52 = vector.broadcast %4 : vector<1x1xf32> to vector<8x1xf32>
    %53 = arith.addf %51, %52 : vector<8x1xf32>
    %cst_18 = arith.constant 0.000000e+00 : f32
    %54 = vector.broadcast %cst_18 : f32 to vector<8x1xf32>
    %55 = arith.maximumf %53, %54 : vector<8x1xf32>
    %56 = arith.addf %6, %55 : vector<8x1xf32>
    %c1_i32 = arith.constant 1 : i32
    %57 = arith.index_cast %c1_i32 : i32 to index
    %c0_19 = arith.constant 0 : index
    %c0_20 = arith.constant 0 : index
    %58 = vector.load %arg0[%57, %c0_19, %c0_20] : memref<8x8x128xf32, #tpu.memory_space<vmem>>, vector<1x8x128xf32>
    %59 = vector.shape_cast %58 : vector<1x8x128xf32> to vector<8x128xf32>
    %cst_21 = arith.constant dense<0.000000e+00> : vector<8x128xf32>
    %60 = tpu.matmul %26, %0, %cst_21 {dimension_numbers = #tpu.dot_dimension_numbers<[1], [0], [0], [1], [0, 0, 1, 1], [], []>} : vector<8x32xf32>, vector<32x128xf32>, vector<8x128xf32> -> vector<8x128xf32>
    %61 = arith.addf %59, %60 : vector<8x128xf32>
    %62 = arith.negf %61 : vector<8x128xf32>
    %63 = math.exp %62 : vector<8x128xf32>
    %cst_22 = arith.constant 1.000000e+00 : f32
    %64 = vector.broadcast %cst_22 : f32 to vector<8x128xf32>
    %65 = arith.addf %64, %63 : vector<8x128xf32>
    %66 = arith.divf %64, %65 : vector<8x128xf32>
    %67 = math.tanh %61 : vector<8x128xf32>
    %68 = vector.extract_strided_slice %66 {offsets = [0, 0], sizes = [8, 32], strides = [1, 1]} : vector<8x128xf32> to vector<8x32xf32>
    %69 = vector.extract_strided_slice %66 {offsets = [0, 32], sizes = [8, 32], strides = [1, 1]} : vector<8x128xf32> to vector<8x32xf32>
    %70 = vector.extract_strided_slice %67 {offsets = [0, 64], sizes = [8, 32], strides = [1, 1]} : vector<8x128xf32> to vector<8x32xf32>
    %71 = vector.extract_strided_slice %66 {offsets = [0, 96], sizes = [8, 32], strides = [1, 1]} : vector<8x128xf32> to vector<8x32xf32>
    %72 = arith.mulf %69, %24 : vector<8x32xf32>
    %73 = arith.mulf %68, %70 : vector<8x32xf32>
    %74 = arith.addf %72, %73 : vector<8x32xf32>
    %75 = math.tanh %74 : vector<8x32xf32>
    %76 = arith.mulf %71, %75 : vector<8x32xf32>
    %77 = tpu.concatenate %76, %45 in 1 : vector<8x32xf32>, vector<8x32xf32> -> vector<8x64xf32>
    %cst_23 = arith.constant dense<0.000000e+00> : vector<8x128xf32>
    %78 = tpu.matmul %77, %1, %cst_23 {dimension_numbers = #tpu.dot_dimension_numbers<[1], [0], [0], [1], [0, 0, 1, 1], [], []>} : vector<8x64xf32>, vector<64x128xf32>, vector<8x128xf32> -> vector<8x128xf32>
    %79 = vector.broadcast %2 : vector<1x128xf32> to vector<8x128xf32>
    %80 = arith.addf %78, %79 : vector<8x128xf32>
    %81 = arith.negf %80 : vector<8x128xf32>
    %82 = math.exp %81 : vector<8x128xf32>
    %cst_24 = arith.constant 1.000000e+00 : f32
    %83 = vector.broadcast %cst_24 : f32 to vector<8x128xf32>
    %84 = arith.addf %83, %82 : vector<8x128xf32>
    %85 = arith.divf %83, %84 : vector<8x128xf32>
    %86 = math.tanh %80 : vector<8x128xf32>
    %87 = vector.extract_strided_slice %85 {offsets = [0, 0], sizes = [8, 32], strides = [1, 1]} : vector<8x128xf32> to vector<8x32xf32>
    %88 = vector.extract_strided_slice %85 {offsets = [0, 32], sizes = [8, 32], strides = [1, 1]} : vector<8x128xf32> to vector<8x32xf32>
    %89 = vector.extract_strided_slice %86 {offsets = [0, 64], sizes = [8, 32], strides = [1, 1]} : vector<8x128xf32> to vector<8x32xf32>
    %90 = vector.extract_strided_slice %85 {offsets = [0, 96], sizes = [8, 32], strides = [1, 1]} : vector<8x128xf32> to vector<8x32xf32>
    %91 = arith.mulf %88, %43 : vector<8x32xf32>
    %92 = arith.mulf %87, %89 : vector<8x32xf32>
    %93 = arith.addf %91, %92 : vector<8x32xf32>
    %94 = math.tanh %93 : vector<8x32xf32>
    %95 = arith.mulf %90, %94 : vector<8x32xf32>
    %cst_25 = arith.constant 0.000000e+00 : f32
    %96 = vector.broadcast %cst_25 : f32 to vector<8x32xf32>
    %97 = arith.maximumf %95, %96 : vector<8x32xf32>
    %98 = vector.broadcast %3 : vector<1x32xf32> to vector<8x32xf32>
    %99 = arith.mulf %97, %98 : vector<8x32xf32>
    %cst_26 = arith.constant dense<0.000000e+00> : vector<8xf32>
    %100 = vector.multi_reduction <add>, %99, %cst_26 [1] : vector<8x32xf32> to vector<8xf32>
    %101 = vector.shape_cast %100 : vector<8xf32> to vector<8x1xf32>
    %102 = vector.broadcast %4 : vector<1x1xf32> to vector<8x1xf32>
    %103 = arith.addf %101, %102 : vector<8x1xf32>
    %cst_27 = arith.constant 0.000000e+00 : f32
    %104 = vector.broadcast %cst_27 : f32 to vector<8x1xf32>
    %105 = arith.maximumf %103, %104 : vector<8x1xf32>
    %106 = arith.addf %56, %105 : vector<8x1xf32>
    %c2_i32 = arith.constant 2 : i32
    %107 = arith.index_cast %c2_i32 : i32 to index
    %c0_28 = arith.constant 0 : index
    %c0_29 = arith.constant 0 : index
    %108 = vector.load %arg0[%107, %c0_28, %c0_29] : memref<8x8x128xf32, #tpu.memory_space<vmem>>, vector<1x8x128xf32>
    %109 = vector.shape_cast %108 : vector<1x8x128xf32> to vector<8x128xf32>
    %cst_30 = arith.constant dense<0.000000e+00> : vector<8x128xf32>
    %110 = tpu.matmul %76, %0, %cst_30 {dimension_numbers = #tpu.dot_dimension_numbers<[1], [0], [0], [1], [0, 0, 1, 1], [], []>} : vector<8x32xf32>, vector<32x128xf32>, vector<8x128xf32> -> vector<8x128xf32>
    %111 = arith.addf %109, %110 : vector<8x128xf32>
    %112 = arith.negf %111 : vector<8x128xf32>
    %113 = math.exp %112 : vector<8x128xf32>
    %cst_31 = arith.constant 1.000000e+00 : f32
    %114 = vector.broadcast %cst_31 : f32 to vector<8x128xf32>
    %115 = arith.addf %114, %113 : vector<8x128xf32>
    %116 = arith.divf %114, %115 : vector<8x128xf32>
    %117 = math.tanh %111 : vector<8x128xf32>
    %118 = vector.extract_strided_slice %116 {offsets = [0, 0], sizes = [8, 32], strides = [1, 1]} : vector<8x128xf32> to vector<8x32xf32>
    %119 = vector.extract_strided_slice %116 {offsets = [0, 32], sizes = [8, 32], strides = [1, 1]} : vector<8x128xf32> to vector<8x32xf32>
    %120 = vector.extract_strided_slice %117 {offsets = [0, 64], sizes = [8, 32], strides = [1, 1]} : vector<8x128xf32> to vector<8x32xf32>
    %121 = vector.extract_strided_slice %116 {offsets = [0, 96], sizes = [8, 32], strides = [1, 1]} : vector<8x128xf32> to vector<8x32xf32>
    %122 = arith.mulf %119, %74 : vector<8x32xf32>
    %123 = arith.mulf %118, %120 : vector<8x32xf32>
    %124 = arith.addf %122, %123 : vector<8x32xf32>
    %125 = math.tanh %124 : vector<8x32xf32>
    %126 = arith.mulf %121, %125 : vector<8x32xf32>
    %127 = tpu.concatenate %126, %95 in 1 : vector<8x32xf32>, vector<8x32xf32> -> vector<8x64xf32>
    %cst_32 = arith.constant dense<0.000000e+00> : vector<8x128xf32>
    %128 = tpu.matmul %127, %1, %cst_32 {dimension_numbers = #tpu.dot_dimension_numbers<[1], [0], [0], [1], [0, 0, 1, 1], [], []>} : vector<8x64xf32>, vector<64x128xf32>, vector<8x128xf32> -> vector<8x128xf32>
    %129 = vector.broadcast %2 : vector<1x128xf32> to vector<8x128xf32>
    %130 = arith.addf %128, %129 : vector<8x128xf32>
    %131 = arith.negf %130 : vector<8x128xf32>
    %132 = math.exp %131 : vector<8x128xf32>
    %cst_33 = arith.constant 1.000000e+00 : f32
    %133 = vector.broadcast %cst_33 : f32 to vector<8x128xf32>
    %134 = arith.addf %133, %132 : vector<8x128xf32>
    %135 = arith.divf %133, %134 : vector<8x128xf32>
    %136 = math.tanh %130 : vector<8x128xf32>
    %137 = vector.extract_strided_slice %135 {offsets = [0, 0], sizes = [8, 32], strides = [1, 1]} : vector<8x128xf32> to vector<8x32xf32>
    %138 = vector.extract_strided_slice %135 {offsets = [0, 32], sizes = [8, 32], strides = [1, 1]} : vector<8x128xf32> to vector<8x32xf32>
    %139 = vector.extract_strided_slice %136 {offsets = [0, 64], sizes = [8, 32], strides = [1, 1]} : vector<8x128xf32> to vector<8x32xf32>
    %140 = vector.extract_strided_slice %135 {offsets = [0, 96], sizes = [8, 32], strides = [1, 1]} : vector<8x128xf32> to vector<8x32xf32>
    %141 = arith.mulf %138, %93 : vector<8x32xf32>
    %142 = arith.mulf %137, %139 : vector<8x32xf32>
    %143 = arith.addf %141, %142 : vector<8x32xf32>
    %144 = math.tanh %143 : vector<8x32xf32>
    %145 = arith.mulf %140, %144 : vector<8x32xf32>
    %cst_34 = arith.constant 0.000000e+00 : f32
    %146 = vector.broadcast %cst_34 : f32 to vector<8x32xf32>
    %147 = arith.maximumf %145, %146 : vector<8x32xf32>
    %148 = vector.broadcast %3 : vector<1x32xf32> to vector<8x32xf32>
    %149 = arith.mulf %147, %148 : vector<8x32xf32>
    %cst_35 = arith.constant dense<0.000000e+00> : vector<8xf32>
    %150 = vector.multi_reduction <add>, %149, %cst_35 [1] : vector<8x32xf32> to vector<8xf32>
    %151 = vector.shape_cast %150 : vector<8xf32> to vector<8x1xf32>
    %152 = vector.broadcast %4 : vector<1x1xf32> to vector<8x1xf32>
    %153 = arith.addf %151, %152 : vector<8x1xf32>
    %cst_36 = arith.constant 0.000000e+00 : f32
    %154 = vector.broadcast %cst_36 : f32 to vector<8x1xf32>
    %155 = arith.maximumf %153, %154 : vector<8x1xf32>
    %156 = arith.addf %106, %155 : vector<8x1xf32>
    %c3_i32 = arith.constant 3 : i32
    %157 = arith.index_cast %c3_i32 : i32 to index
    %c0_37 = arith.constant 0 : index
    %c0_38 = arith.constant 0 : index
    %158 = vector.load %arg0[%157, %c0_37, %c0_38] : memref<8x8x128xf32, #tpu.memory_space<vmem>>, vector<1x8x128xf32>
    %159 = vector.shape_cast %158 : vector<1x8x128xf32> to vector<8x128xf32>
    %cst_39 = arith.constant dense<0.000000e+00> : vector<8x128xf32>
    %160 = tpu.matmul %126, %0, %cst_39 {dimension_numbers = #tpu.dot_dimension_numbers<[1], [0], [0], [1], [0, 0, 1, 1], [], []>} : vector<8x32xf32>, vector<32x128xf32>, vector<8x128xf32> -> vector<8x128xf32>
    %161 = arith.addf %159, %160 : vector<8x128xf32>
    %162 = arith.negf %161 : vector<8x128xf32>
    %163 = math.exp %162 : vector<8x128xf32>
    %cst_40 = arith.constant 1.000000e+00 : f32
    %164 = vector.broadcast %cst_40 : f32 to vector<8x128xf32>
    %165 = arith.addf %164, %163 : vector<8x128xf32>
    %166 = arith.divf %164, %165 : vector<8x128xf32>
    %167 = math.tanh %161 : vector<8x128xf32>
    %168 = vector.extract_strided_slice %166 {offsets = [0, 0], sizes = [8, 32], strides = [1, 1]} : vector<8x128xf32> to vector<8x32xf32>
    %169 = vector.extract_strided_slice %166 {offsets = [0, 32], sizes = [8, 32], strides = [1, 1]} : vector<8x128xf32> to vector<8x32xf32>
    %170 = vector.extract_strided_slice %167 {offsets = [0, 64], sizes = [8, 32], strides = [1, 1]} : vector<8x128xf32> to vector<8x32xf32>
    %171 = vector.extract_strided_slice %166 {offsets = [0, 96], sizes = [8, 32], strides = [1, 1]} : vector<8x128xf32> to vector<8x32xf32>
    %172 = arith.mulf %169, %124 : vector<8x32xf32>
    %173 = arith.mulf %168, %170 : vector<8x32xf32>
    %174 = arith.addf %172, %173 : vector<8x32xf32>
    %175 = math.tanh %174 : vector<8x32xf32>
    %176 = arith.mulf %171, %175 : vector<8x32xf32>
    %177 = tpu.concatenate %176, %145 in 1 : vector<8x32xf32>, vector<8x32xf32> -> vector<8x64xf32>
    %cst_41 = arith.constant dense<0.000000e+00> : vector<8x128xf32>
    %178 = tpu.matmul %177, %1, %cst_41 {dimension_numbers = #tpu.dot_dimension_numbers<[1], [0], [0], [1], [0, 0, 1, 1], [], []>} : vector<8x64xf32>, vector<64x128xf32>, vector<8x128xf32> -> vector<8x128xf32>
    %179 = vector.broadcast %2 : vector<1x128xf32> to vector<8x128xf32>
    %180 = arith.addf %178, %179 : vector<8x128xf32>
    %181 = arith.negf %180 : vector<8x128xf32>
    %182 = math.exp %181 : vector<8x128xf32>
    %cst_42 = arith.constant 1.000000e+00 : f32
    %183 = vector.broadcast %cst_42 : f32 to vector<8x128xf32>
    %184 = arith.addf %183, %182 : vector<8x128xf32>
    %185 = arith.divf %183, %184 : vector<8x128xf32>
    %186 = math.tanh %180 : vector<8x128xf32>
    %187 = vector.extract_strided_slice %185 {offsets = [0, 0], sizes = [8, 32], strides = [1, 1]} : vector<8x128xf32> to vector<8x32xf32>
    %188 = vector.extract_strided_slice %185 {offsets = [0, 32], sizes = [8, 32], strides = [1, 1]} : vector<8x128xf32> to vector<8x32xf32>
    %189 = vector.extract_strided_slice %186 {offsets = [0, 64], sizes = [8, 32], strides = [1, 1]} : vector<8x128xf32> to vector<8x32xf32>
    %190 = vector.extract_strided_slice %185 {offsets = [0, 96], sizes = [8, 32], strides = [1, 1]} : vector<8x128xf32> to vector<8x32xf32>
    %191 = arith.mulf %188, %143 : vector<8x32xf32>
    %192 = arith.mulf %187, %189 : vector<8x32xf32>
    %193 = arith.addf %191, %192 : vector<8x32xf32>
    %194 = math.tanh %193 : vector<8x32xf32>
    %195 = arith.mulf %190, %194 : vector<8x32xf32>
    %cst_43 = arith.constant 0.000000e+00 : f32
    %196 = vector.broadcast %cst_43 : f32 to vector<8x32xf32>
    %197 = arith.maximumf %195, %196 : vector<8x32xf32>
    %198 = vector.broadcast %3 : vector<1x32xf32> to vector<8x32xf32>
    %199 = arith.mulf %197, %198 : vector<8x32xf32>
    %cst_44 = arith.constant dense<0.000000e+00> : vector<8xf32>
    %200 = vector.multi_reduction <add>, %199, %cst_44 [1] : vector<8x32xf32> to vector<8xf32>
    %201 = vector.shape_cast %200 : vector<8xf32> to vector<8x1xf32>
    %202 = vector.broadcast %4 : vector<1x1xf32> to vector<8x1xf32>
    %203 = arith.addf %201, %202 : vector<8x1xf32>
    %cst_45 = arith.constant 0.000000e+00 : f32
    %204 = vector.broadcast %cst_45 : f32 to vector<8x1xf32>
    %205 = arith.maximumf %203, %204 : vector<8x1xf32>
    %206 = arith.addf %156, %205 : vector<8x1xf32>
    %c4_i32 = arith.constant 4 : i32
    %207 = arith.index_cast %c4_i32 : i32 to index
    %c0_46 = arith.constant 0 : index
    %c0_47 = arith.constant 0 : index
    %208 = vector.load %arg0[%207, %c0_46, %c0_47] : memref<8x8x128xf32, #tpu.memory_space<vmem>>, vector<1x8x128xf32>
    %209 = vector.shape_cast %208 : vector<1x8x128xf32> to vector<8x128xf32>
    %cst_48 = arith.constant dense<0.000000e+00> : vector<8x128xf32>
    %210 = tpu.matmul %176, %0, %cst_48 {dimension_numbers = #tpu.dot_dimension_numbers<[1], [0], [0], [1], [0, 0, 1, 1], [], []>} : vector<8x32xf32>, vector<32x128xf32>, vector<8x128xf32> -> vector<8x128xf32>
    %211 = arith.addf %209, %210 : vector<8x128xf32>
    %212 = arith.negf %211 : vector<8x128xf32>
    %213 = math.exp %212 : vector<8x128xf32>
    %cst_49 = arith.constant 1.000000e+00 : f32
    %214 = vector.broadcast %cst_49 : f32 to vector<8x128xf32>
    %215 = arith.addf %214, %213 : vector<8x128xf32>
    %216 = arith.divf %214, %215 : vector<8x128xf32>
    %217 = math.tanh %211 : vector<8x128xf32>
    %218 = vector.extract_strided_slice %216 {offsets = [0, 0], sizes = [8, 32], strides = [1, 1]} : vector<8x128xf32> to vector<8x32xf32>
    %219 = vector.extract_strided_slice %216 {offsets = [0, 32], sizes = [8, 32], strides = [1, 1]} : vector<8x128xf32> to vector<8x32xf32>
    %220 = vector.extract_strided_slice %217 {offsets = [0, 64], sizes = [8, 32], strides = [1, 1]} : vector<8x128xf32> to vector<8x32xf32>
    %221 = vector.extract_strided_slice %216 {offsets = [0, 96], sizes = [8, 32], strides = [1, 1]} : vector<8x128xf32> to vector<8x32xf32>
    %222 = arith.mulf %219, %174 : vector<8x32xf32>
    %223 = arith.mulf %218, %220 : vector<8x32xf32>
    %224 = arith.addf %222, %223 : vector<8x32xf32>
    %225 = math.tanh %224 : vector<8x32xf32>
    %226 = arith.mulf %221, %225 : vector<8x32xf32>
    %227 = tpu.concatenate %226, %195 in 1 : vector<8x32xf32>, vector<8x32xf32> -> vector<8x64xf32>
    %cst_50 = arith.constant dense<0.000000e+00> : vector<8x128xf32>
    %228 = tpu.matmul %227, %1, %cst_50 {dimension_numbers = #tpu.dot_dimension_numbers<[1], [0], [0], [1], [0, 0, 1, 1], [], []>} : vector<8x64xf32>, vector<64x128xf32>, vector<8x128xf32> -> vector<8x128xf32>
    %229 = vector.broadcast %2 : vector<1x128xf32> to vector<8x128xf32>
    %230 = arith.addf %228, %229 : vector<8x128xf32>
    %231 = arith.negf %230 : vector<8x128xf32>
    %232 = math.exp %231 : vector<8x128xf32>
    %cst_51 = arith.constant 1.000000e+00 : f32
    %233 = vector.broadcast %cst_51 : f32 to vector<8x128xf32>
    %234 = arith.addf %233, %232 : vector<8x128xf32>
    %235 = arith.divf %233, %234 : vector<8x128xf32>
    %236 = math.tanh %230 : vector<8x128xf32>
    %237 = vector.extract_strided_slice %235 {offsets = [0, 0], sizes = [8, 32], strides = [1, 1]} : vector<8x128xf32> to vector<8x32xf32>
    %238 = vector.extract_strided_slice %235 {offsets = [0, 32], sizes = [8, 32], strides = [1, 1]} : vector<8x128xf32> to vector<8x32xf32>
    %239 = vector.extract_strided_slice %236 {offsets = [0, 64], sizes = [8, 32], strides = [1, 1]} : vector<8x128xf32> to vector<8x32xf32>
    %240 = vector.extract_strided_slice %235 {offsets = [0, 96], sizes = [8, 32], strides = [1, 1]} : vector<8x128xf32> to vector<8x32xf32>
    %241 = arith.mulf %238, %193 : vector<8x32xf32>
    %242 = arith.mulf %237, %239 : vector<8x32xf32>
    %243 = arith.addf %241, %242 : vector<8x32xf32>
    %244 = math.tanh %243 : vector<8x32xf32>
    %245 = arith.mulf %240, %244 : vector<8x32xf32>
    %cst_52 = arith.constant 0.000000e+00 : f32
    %246 = vector.broadcast %cst_52 : f32 to vector<8x32xf32>
    %247 = arith.maximumf %245, %246 : vector<8x32xf32>
    %248 = vector.broadcast %3 : vector<1x32xf32> to vector<8x32xf32>
    %249 = arith.mulf %247, %248 : vector<8x32xf32>
    %cst_53 = arith.constant dense<0.000000e+00> : vector<8xf32>
    %250 = vector.multi_reduction <add>, %249, %cst_53 [1] : vector<8x32xf32> to vector<8xf32>
    %251 = vector.shape_cast %250 : vector<8xf32> to vector<8x1xf32>
    %252 = vector.broadcast %4 : vector<1x1xf32> to vector<8x1xf32>
    %253 = arith.addf %251, %252 : vector<8x1xf32>
    %cst_54 = arith.constant 0.000000e+00 : f32
    %254 = vector.broadcast %cst_54 : f32 to vector<8x1xf32>
    %255 = arith.maximumf %253, %254 : vector<8x1xf32>
    %256 = arith.addf %206, %255 : vector<8x1xf32>
    %c5_i32 = arith.constant 5 : i32
    %257 = arith.index_cast %c5_i32 : i32 to index
    %c0_55 = arith.constant 0 : index
    %c0_56 = arith.constant 0 : index
    %258 = vector.load %arg0[%257, %c0_55, %c0_56] : memref<8x8x128xf32, #tpu.memory_space<vmem>>, vector<1x8x128xf32>
    %259 = vector.shape_cast %258 : vector<1x8x128xf32> to vector<8x128xf32>
    %cst_57 = arith.constant dense<0.000000e+00> : vector<8x128xf32>
    %260 = tpu.matmul %226, %0, %cst_57 {dimension_numbers = #tpu.dot_dimension_numbers<[1], [0], [0], [1], [0, 0, 1, 1], [], []>} : vector<8x32xf32>, vector<32x128xf32>, vector<8x128xf32> -> vector<8x128xf32>
    %261 = arith.addf %259, %260 : vector<8x128xf32>
    %262 = arith.negf %261 : vector<8x128xf32>
    %263 = math.exp %262 : vector<8x128xf32>
    %cst_58 = arith.constant 1.000000e+00 : f32
    %264 = vector.broadcast %cst_58 : f32 to vector<8x128xf32>
    %265 = arith.addf %264, %263 : vector<8x128xf32>
    %266 = arith.divf %264, %265 : vector<8x128xf32>
    %267 = math.tanh %261 : vector<8x128xf32>
    %268 = vector.extract_strided_slice %266 {offsets = [0, 0], sizes = [8, 32], strides = [1, 1]} : vector<8x128xf32> to vector<8x32xf32>
    %269 = vector.extract_strided_slice %266 {offsets = [0, 32], sizes = [8, 32], strides = [1, 1]} : vector<8x128xf32> to vector<8x32xf32>
    %270 = vector.extract_strided_slice %267 {offsets = [0, 64], sizes = [8, 32], strides = [1, 1]} : vector<8x128xf32> to vector<8x32xf32>
    %271 = vector.extract_strided_slice %266 {offsets = [0, 96], sizes = [8, 32], strides = [1, 1]} : vector<8x128xf32> to vector<8x32xf32>
    %272 = arith.mulf %269, %224 : vector<8x32xf32>
    %273 = arith.mulf %268, %270 : vector<8x32xf32>
    %274 = arith.addf %272, %273 : vector<8x32xf32>
    %275 = math.tanh %274 : vector<8x32xf32>
    %276 = arith.mulf %271, %275 : vector<8x32xf32>
    %277 = tpu.concatenate %276, %245 in 1 : vector<8x32xf32>, vector<8x32xf32> -> vector<8x64xf32>
    %cst_59 = arith.constant dense<0.000000e+00> : vector<8x128xf32>
    %278 = tpu.matmul %277, %1, %cst_59 {dimension_numbers = #tpu.dot_dimension_numbers<[1], [0], [0], [1], [0, 0, 1, 1], [], []>} : vector<8x64xf32>, vector<64x128xf32>, vector<8x128xf32> -> vector<8x128xf32>
    %279 = vector.broadcast %2 : vector<1x128xf32> to vector<8x128xf32>
    %280 = arith.addf %278, %279 : vector<8x128xf32>
    %281 = arith.negf %280 : vector<8x128xf32>
    %282 = math.exp %281 : vector<8x128xf32>
    %cst_60 = arith.constant 1.000000e+00 : f32
    %283 = vector.broadcast %cst_60 : f32 to vector<8x128xf32>
    %284 = arith.addf %283, %282 : vector<8x128xf32>
    %285 = arith.divf %283, %284 : vector<8x128xf32>
    %286 = math.tanh %280 : vector<8x128xf32>
    %287 = vector.extract_strided_slice %285 {offsets = [0, 0], sizes = [8, 32], strides = [1, 1]} : vector<8x128xf32> to vector<8x32xf32>
    %288 = vector.extract_strided_slice %285 {offsets = [0, 32], sizes = [8, 32], strides = [1, 1]} : vector<8x128xf32> to vector<8x32xf32>
    %289 = vector.extract_strided_slice %286 {offsets = [0, 64], sizes = [8, 32], strides = [1, 1]} : vector<8x128xf32> to vector<8x32xf32>
    %290 = vector.extract_strided_slice %285 {offsets = [0, 96], sizes = [8, 32], strides = [1, 1]} : vector<8x128xf32> to vector<8x32xf32>
    %291 = arith.mulf %288, %243 : vector<8x32xf32>
    %292 = arith.mulf %287, %289 : vector<8x32xf32>
    %293 = arith.addf %291, %292 : vector<8x32xf32>
    %294 = math.tanh %293 : vector<8x32xf32>
    %295 = arith.mulf %290, %294 : vector<8x32xf32>
    %cst_61 = arith.constant 0.000000e+00 : f32
    %296 = vector.broadcast %cst_61 : f32 to vector<8x32xf32>
    %297 = arith.maximumf %295, %296 : vector<8x32xf32>
    %298 = vector.broadcast %3 : vector<1x32xf32> to vector<8x32xf32>
    %299 = arith.mulf %297, %298 : vector<8x32xf32>
    %cst_62 = arith.constant dense<0.000000e+00> : vector<8xf32>
    %300 = vector.multi_reduction <add>, %299, %cst_62 [1] : vector<8x32xf32> to vector<8xf32>
    %301 = vector.shape_cast %300 : vector<8xf32> to vector<8x1xf32>
    %302 = vector.broadcast %4 : vector<1x1xf32> to vector<8x1xf32>
    %303 = arith.addf %301, %302 : vector<8x1xf32>
    %cst_63 = arith.constant 0.000000e+00 : f32
    %304 = vector.broadcast %cst_63 : f32 to vector<8x1xf32>
    %305 = arith.maximumf %303, %304 : vector<8x1xf32>
    %306 = arith.addf %256, %305 : vector<8x1xf32>
    %c6_i32 = arith.constant 6 : i32
    %307 = arith.index_cast %c6_i32 : i32 to index
    %c0_64 = arith.constant 0 : index
    %c0_65 = arith.constant 0 : index
    %308 = vector.load %arg0[%307, %c0_64, %c0_65] : memref<8x8x128xf32, #tpu.memory_space<vmem>>, vector<1x8x128xf32>
    %309 = vector.shape_cast %308 : vector<1x8x128xf32> to vector<8x128xf32>
    %cst_66 = arith.constant dense<0.000000e+00> : vector<8x128xf32>
    %310 = tpu.matmul %276, %0, %cst_66 {dimension_numbers = #tpu.dot_dimension_numbers<[1], [0], [0], [1], [0, 0, 1, 1], [], []>} : vector<8x32xf32>, vector<32x128xf32>, vector<8x128xf32> -> vector<8x128xf32>
    %311 = arith.addf %309, %310 : vector<8x128xf32>
    %312 = arith.negf %311 : vector<8x128xf32>
    %313 = math.exp %312 : vector<8x128xf32>
    %cst_67 = arith.constant 1.000000e+00 : f32
    %314 = vector.broadcast %cst_67 : f32 to vector<8x128xf32>
    %315 = arith.addf %314, %313 : vector<8x128xf32>
    %316 = arith.divf %314, %315 : vector<8x128xf32>
    %317 = math.tanh %311 : vector<8x128xf32>
    %318 = vector.extract_strided_slice %316 {offsets = [0, 0], sizes = [8, 32], strides = [1, 1]} : vector<8x128xf32> to vector<8x32xf32>
    %319 = vector.extract_strided_slice %316 {offsets = [0, 32], sizes = [8, 32], strides = [1, 1]} : vector<8x128xf32> to vector<8x32xf32>
    %320 = vector.extract_strided_slice %317 {offsets = [0, 64], sizes = [8, 32], strides = [1, 1]} : vector<8x128xf32> to vector<8x32xf32>
    %321 = vector.extract_strided_slice %316 {offsets = [0, 96], sizes = [8, 32], strides = [1, 1]} : vector<8x128xf32> to vector<8x32xf32>
    %322 = arith.mulf %319, %274 : vector<8x32xf32>
    %323 = arith.mulf %318, %320 : vector<8x32xf32>
    %324 = arith.addf %322, %323 : vector<8x32xf32>
    %325 = math.tanh %324 : vector<8x32xf32>
    %326 = arith.mulf %321, %325 : vector<8x32xf32>
    %327 = tpu.concatenate %326, %295 in 1 : vector<8x32xf32>, vector<8x32xf32> -> vector<8x64xf32>
    %cst_68 = arith.constant dense<0.000000e+00> : vector<8x128xf32>
    %328 = tpu.matmul %327, %1, %cst_68 {dimension_numbers = #tpu.dot_dimension_numbers<[1], [0], [0], [1], [0, 0, 1, 1], [], []>} : vector<8x64xf32>, vector<64x128xf32>, vector<8x128xf32> -> vector<8x128xf32>
    %329 = vector.broadcast %2 : vector<1x128xf32> to vector<8x128xf32>
    %330 = arith.addf %328, %329 : vector<8x128xf32>
    %331 = arith.negf %330 : vector<8x128xf32>
    %332 = math.exp %331 : vector<8x128xf32>
    %cst_69 = arith.constant 1.000000e+00 : f32
    %333 = vector.broadcast %cst_69 : f32 to vector<8x128xf32>
    %334 = arith.addf %333, %332 : vector<8x128xf32>
    %335 = arith.divf %333, %334 : vector<8x128xf32>
    %336 = math.tanh %330 : vector<8x128xf32>
    %337 = vector.extract_strided_slice %335 {offsets = [0, 0], sizes = [8, 32], strides = [1, 1]} : vector<8x128xf32> to vector<8x32xf32>
    %338 = vector.extract_strided_slice %335 {offsets = [0, 32], sizes = [8, 32], strides = [1, 1]} : vector<8x128xf32> to vector<8x32xf32>
    %339 = vector.extract_strided_slice %336 {offsets = [0, 64], sizes = [8, 32], strides = [1, 1]} : vector<8x128xf32> to vector<8x32xf32>
    %340 = vector.extract_strided_slice %335 {offsets = [0, 96], sizes = [8, 32], strides = [1, 1]} : vector<8x128xf32> to vector<8x32xf32>
    %341 = arith.mulf %338, %293 : vector<8x32xf32>
    %342 = arith.mulf %337, %339 : vector<8x32xf32>
    %343 = arith.addf %341, %342 : vector<8x32xf32>
    %344 = math.tanh %343 : vector<8x32xf32>
    %345 = arith.mulf %340, %344 : vector<8x32xf32>
    %cst_70 = arith.constant 0.000000e+00 : f32
    %346 = vector.broadcast %cst_70 : f32 to vector<8x32xf32>
    %347 = arith.maximumf %345, %346 : vector<8x32xf32>
    %348 = vector.broadcast %3 : vector<1x32xf32> to vector<8x32xf32>
    %349 = arith.mulf %347, %348 : vector<8x32xf32>
    %cst_71 = arith.constant dense<0.000000e+00> : vector<8xf32>
    %350 = vector.multi_reduction <add>, %349, %cst_71 [1] : vector<8x32xf32> to vector<8xf32>
    %351 = vector.shape_cast %350 : vector<8xf32> to vector<8x1xf32>
    %352 = vector.broadcast %4 : vector<1x1xf32> to vector<8x1xf32>
    %353 = arith.addf %351, %352 : vector<8x1xf32>
    %cst_72 = arith.constant 0.000000e+00 : f32
    %354 = vector.broadcast %cst_72 : f32 to vector<8x1xf32>
    %355 = arith.maximumf %353, %354 : vector<8x1xf32>
    %356 = arith.addf %306, %355 : vector<8x1xf32>
    %c7_i32 = arith.constant 7 : i32
    %357 = arith.index_cast %c7_i32 : i32 to index
    %c0_73 = arith.constant 0 : index
    %c0_74 = arith.constant 0 : index
    %358 = vector.load %arg0[%357, %c0_73, %c0_74] : memref<8x8x128xf32, #tpu.memory_space<vmem>>, vector<1x8x128xf32>
    %359 = vector.shape_cast %358 : vector<1x8x128xf32> to vector<8x128xf32>
    %cst_75 = arith.constant dense<0.000000e+00> : vector<8x128xf32>
    %360 = tpu.matmul %326, %0, %cst_75 {dimension_numbers = #tpu.dot_dimension_numbers<[1], [0], [0], [1], [0, 0, 1, 1], [], []>} : vector<8x32xf32>, vector<32x128xf32>, vector<8x128xf32> -> vector<8x128xf32>
    %361 = arith.addf %359, %360 : vector<8x128xf32>
    %362 = arith.negf %361 : vector<8x128xf32>
    %363 = math.exp %362 : vector<8x128xf32>
    %cst_76 = arith.constant 1.000000e+00 : f32
    %364 = vector.broadcast %cst_76 : f32 to vector<8x128xf32>
    %365 = arith.addf %364, %363 : vector<8x128xf32>
    %366 = arith.divf %364, %365 : vector<8x128xf32>
    %367 = math.tanh %361 : vector<8x128xf32>
    %368 = vector.extract_strided_slice %366 {offsets = [0, 0], sizes = [8, 32], strides = [1, 1]} : vector<8x128xf32> to vector<8x32xf32>
    %369 = vector.extract_strided_slice %366 {offsets = [0, 32], sizes = [8, 32], strides = [1, 1]} : vector<8x128xf32> to vector<8x32xf32>
    %370 = vector.extract_strided_slice %367 {offsets = [0, 64], sizes = [8, 32], strides = [1, 1]} : vector<8x128xf32> to vector<8x32xf32>
    %371 = vector.extract_strided_slice %366 {offsets = [0, 96], sizes = [8, 32], strides = [1, 1]} : vector<8x128xf32> to vector<8x32xf32>
    %372 = arith.mulf %369, %324 : vector<8x32xf32>
    %373 = arith.mulf %368, %370 : vector<8x32xf32>
    %374 = arith.addf %372, %373 : vector<8x32xf32>
    %375 = math.tanh %374 : vector<8x32xf32>
    %376 = arith.mulf %371, %375 : vector<8x32xf32>
    %377 = tpu.concatenate %376, %345 in 1 : vector<8x32xf32>, vector<8x32xf32> -> vector<8x64xf32>
    %cst_77 = arith.constant dense<0.000000e+00> : vector<8x128xf32>
    %378 = tpu.matmul %377, %1, %cst_77 {dimension_numbers = #tpu.dot_dimension_numbers<[1], [0], [0], [1], [0, 0, 1, 1], [], []>} : vector<8x64xf32>, vector<64x128xf32>, vector<8x128xf32> -> vector<8x128xf32>
    %379 = vector.broadcast %2 : vector<1x128xf32> to vector<8x128xf32>
    %380 = arith.addf %378, %379 : vector<8x128xf32>
    %381 = arith.negf %380 : vector<8x128xf32>
    %382 = math.exp %381 : vector<8x128xf32>
    %cst_78 = arith.constant 1.000000e+00 : f32
    %383 = vector.broadcast %cst_78 : f32 to vector<8x128xf32>
    %384 = arith.addf %383, %382 : vector<8x128xf32>
    %385 = arith.divf %383, %384 : vector<8x128xf32>
    %386 = math.tanh %380 : vector<8x128xf32>
    %387 = vector.extract_strided_slice %385 {offsets = [0, 0], sizes = [8, 32], strides = [1, 1]} : vector<8x128xf32> to vector<8x32xf32>
    %388 = vector.extract_strided_slice %385 {offsets = [0, 32], sizes = [8, 32], strides = [1, 1]} : vector<8x128xf32> to vector<8x32xf32>
    %389 = vector.extract_strided_slice %386 {offsets = [0, 64], sizes = [8, 32], strides = [1, 1]} : vector<8x128xf32> to vector<8x32xf32>
    %390 = vector.extract_strided_slice %385 {offsets = [0, 96], sizes = [8, 32], strides = [1, 1]} : vector<8x128xf32> to vector<8x32xf32>
    %391 = arith.mulf %388, %343 : vector<8x32xf32>
    %392 = arith.mulf %387, %389 : vector<8x32xf32>
    %393 = arith.addf %391, %392 : vector<8x32xf32>
    %394 = math.tanh %393 : vector<8x32xf32>
    %395 = arith.mulf %390, %394 : vector<8x32xf32>
    %cst_79 = arith.constant 0.000000e+00 : f32
    %396 = vector.broadcast %cst_79 : f32 to vector<8x32xf32>
    %397 = arith.maximumf %395, %396 : vector<8x32xf32>
    %398 = vector.broadcast %3 : vector<1x32xf32> to vector<8x32xf32>
    %399 = arith.mulf %397, %398 : vector<8x32xf32>
    %cst_80 = arith.constant dense<0.000000e+00> : vector<8xf32>
    %400 = vector.multi_reduction <add>, %399, %cst_80 [1] : vector<8x32xf32> to vector<8xf32>
    %401 = vector.shape_cast %400 : vector<8xf32> to vector<8x1xf32>
    %402 = vector.broadcast %4 : vector<1x1xf32> to vector<8x1xf32>
    %403 = arith.addf %401, %402 : vector<8x1xf32>
    %cst_81 = arith.constant 0.000000e+00 : f32
    %404 = vector.broadcast %cst_81 : f32 to vector<8x1xf32>
    %405 = arith.maximumf %403, %404 : vector<8x1xf32>
    %406 = arith.addf %356, %405 : vector<8x1xf32>
    %c8_i32 = arith.constant 8 : i32
    %cst_82 = arith.constant 1.250000e-01 : f32
    %407 = vector.broadcast %cst_82 : f32 to vector<8x1xf32>
    %408 = arith.mulf %406, %407 : vector<8x1xf32>
    %c0_83 = arith.constant 0 : index
    %c0_84 = arith.constant 0 : index
    %409 = vector.load %arg6[%c0_83, %c0_84] : memref<8x1xf32, #tpu.memory_space<vmem>>, vector<8x1xf32>
    tpu.vector_store %arg6[%c0_83, %c0_84], %408 {strides = array<i32>} : memref<8x1xf32, #tpu.memory_space<vmem>>, vector<8x1xf32>,
    return
  }
}

</mosaic_0001>

<llo_original>
// kernel: lstm_model_forward.1
$region0: #{lstm_model_forward.1}
  #allocation0 [shape = 'u32[]', space=smem, size = 0x4, offset = 0x4, fixed_abs, tag = 'smem constant byte address 0x4 - core index']
  #allocation1 [shape = 'u32[72,128]{1,0:T(1,128)}', space=vmem, size = 0x9000, scoped, tag = 'internal scratch']
  #allocation2 [shape = 'f32[1,1]{1,0:T(1,128)S(1)}', space=vmem, size = 0x200, scoped, tag = 'scoped memory for lstm_model_forward.1']
  %s0 = inlined_call_operand.vmem [shape: f32[8,8,128], index: 0, kind: input, shape index: {}]
  %s1 = inlined_call_operand.vmem [shape: f32[32,128], index: 1, kind: input, shape index: {}]
  %s2 = inlined_call_operand.vmem [shape: f32[64,128], index: 2, kind: input, shape index: {}]
  %s3 = inlined_call_operand.vmem [shape: f32[1,128], index: 3, kind: input, shape index: {}]
  %s4 = inlined_call_operand.vmem [shape: f32[1,32], index: 4, kind: input, shape index: {}]
  %s5 = inlined_call_operand.<no memory space> [shape: f32[1,1], index: 5, kind: input, shape index: {}]
  %s6 = inlined_call_operand.vmem [shape: f32[8,1], index: 6, kind: output, shape index: {}]
  %s7 = sld [smem:[#allocation0]]
  $region34: #{lstm_model_forward.1} parent=0
    _
  %s9 = ssub.s32 1, %s7
  %s10 = scalar_select 0, %s9, %s7
  %v11 = vstv %s5
  %12 = vst [vmem:[#allocation2] sm:$0x1] %v11
  // Predicated region
  $region2: #{lstm_model_forward.1} parent=0 // pred_check
    _
  $region3: #{lstm_model_forward.1} parent=0 // pred_check_branch
    %14 = sbr.rel (0) target = $region5
  $region4: #{lstm_model_forward.1} parent=0 // pred_region
    _
  $region5: #{lstm_model_forward.1} parent=0 // pred_fallthru
    _
  // Predicated region
  $region6: #{lstm_model_forward.1} parent=0 // pred_check
    _
  $region7: #{lstm_model_forward.1} parent=0 // pred_check_branch
    %16 = sbr.rel (0) target = $region9
  $region8: #{lstm_model_forward.1} parent=0 // pred_region
    _
  $region9: #{lstm_model_forward.1} parent=0 // pred_fallthru
    _
  // Predicated region
  $region10: #{lstm_model_forward.1} parent=0 // pred_check
    _
  $region11: #{lstm_model_forward.1} parent=0 // pred_check_branch
    %18 = sbr.rel (0) target = $region13
  $region12: #{lstm_model_forward.1} parent=0 // pred_region
    _
  $region13: #{lstm_model_forward.1} parent=0 // pred_fallthru
    _
  // Predicated region
  $region14: #{lstm_model_forward.1} parent=0 // pred_check
    _
  $region15: #{lstm_model_forward.1} parent=0 // pred_check_branch
    %20 = sbr.rel (0) target = $region17
  $region16: #{lstm_model_forward.1} parent=0 // pred_region
    _
  $region17: #{lstm_model_forward.1} parent=0 // pred_fallthru
    _
  // Predicated region
  $region18: #{lstm_model_forward.1} parent=0 // pred_check
    _
  $region19: #{lstm_model_forward.1} parent=0 // pred_check_branch
    %22 = sbr.rel (0) target = $region21
  $region20: #{lstm_model_forward.1} parent=0 // pred_region
    _
  $region21: #{lstm_model_forward.1} parent=0 // pred_fallthru
    _
  // Predicated region
  $region22: #{lstm_model_forward.1} parent=0 // pred_check
    _
  $region23: #{lstm_model_forward.1} parent=0 // pred_check_branch
    %24 = sbr.rel (0) target = $region25
  $region24: #{lstm_model_forward.1} parent=0 // pred_region
    _
  $region25: #{lstm_model_forward.1} parent=0 // pred_fallthru
    _
  %v25 = vld [vmem:[%s1] sm:$0xff]
  %v26 = vld [vmem:[%s1 + $0x8] sm:$0xff]
  %v27 = vld [vmem:[%s1 + $0x10] sm:$0xff]
  %v28 = vld [vmem:[%s1 + $0x18] sm:$0xff]
  %v29 = vld [vmem:[%s2] sm:$0xff]
  %v30 = vld [vmem:[%s2 + $0x8] sm:$0xff]
  %v31 = vld [vmem:[%s2 + $0x10] sm:$0xff]
  %v32 = vld [vmem:[%s2 + $0x18] sm:$0xff]
  %v33 = vld [vmem:[%s2 + $0x20] sm:$0xff]
  %v34 = vld [vmem:[%s2 + $0x28] sm:$0xff]
  %v35 = vld [vmem:[%s2 + $0x30] sm:$0xff]
  %v36 = vld [vmem:[%s2 + $0x38] sm:$0xff]
  %v37 = vld [vmem:[%s3] sm:$0x1]
  %v38 = vld [vmem:[%s4] sm:$0x1]
  %v39 = vld [vmem:[#allocation2] sm:$0x1]
  %v40 = vld [vmem:[%s0] sm:$0xff]
  %vm41 = vcmask 261120
  %v43 = vsel %vm41, 0.0, 0
  %45 = vmatpush.msra.mxu0 0.0
  %46 = vmatpush.msra.mxu0 0.0
  %47 = vmatpush.msra.mxu0 0.0
  %48 = vmatpush.msra.mxu0 0.0
  %49 = vmatpush.msra.mxu0 0.0
  %50 = vmatpush.msra.mxu0 0.0
  %51 = vmatpush.msra.mxu0 0.0
  %52 = vmatpush.msra.mxu0 0.0
  %53 = vmatpush.msra.mxu0 0.0
  %54 = vmatpush.msra.mxu0 0.0
  %55 = vmatpush.msra.mxu0 0.0
  %56 = vmatpush.msra.mxu0 0.0
  %57 = vmatpush.msra.mxu0 %v28
  %58 = vmatpush.msra.mxu0 %v27
  %59 = vmatpush.msra.mxu0 %v26
  %60 = vmatpush.msra.mxu0 %v25
  %61 = vmatmul.f32.gmra.mxu0 %v43
  %v62 = vpop.f32.mrf.mxu0
  %v63 = vadd.f32 0.0, %v62
  %64 = vdwg.mxu0
  %v65 = vadd.f32 %v40, %v63
  %v66 = vxor.u32 %v65, 2147483648
  %v67 = vmul.f32 %v66, 1.442695
  %v68 = vpow.pop %v67
  %v69 = vadd.f32 %v68, 1.0
  %v70 = vrcp.pop %v69
  %v71 = vmul.f32 %v69, %v70
  %v72 = vsub.f32 1.0, %v71
  %v73 = vmul.f32 %v70, %v72
  %v74 = vadd.f32 %v70, %v73
  %vm75 = vweird.f32 %v69
  %vm76 = vweird.f32 %v70
  %vm77 = vmor %vm75, %vm76
  %v78 = vsel %vm77, %v70, %v74
  %v79 = vand.u32 2147483647, %v69
  %vm80 = vcmp.eq.f32.partialorder %v79, 8.507059e+37
  %v81 = vand.u32 %v69, 2147483648
  %v82 = vor.u32 1.1754944e-38, %v81
  %v83 = vsel %vm80, %v82, %v78
  %v84 = vmul.f32 1.0, %v83
  %v85 = vtanh.pop %v65
  %v86 = vmul.f32 %v84, 0.0
  %88 = vrot.lane.b32.xlu0 %v85, 64
  %v89 = vpop.permute.xlu0 %88
  %v91 = vmul.f32 %v84, %v89
  %93 = vrot.lane.b32.xlu0 %v91, 32
  %v94 = vpop.permute.xlu0 %93
  %v96 = vadd.f32 %v86, %v94
  %v97 = vtanh.pop %v96
  %99 = vrot.lane.b32.xlu0 %v97, 64
  %v100 = vpop.permute.xlu0 %99
  %v102 = vmul.f32 %v84, %v100
  %104 = vrot.lane.b32.xlu0 %v102, 32
  %v105 = vpop.permute.xlu0 %104
  %v107 = vsel %vm41, %v105, 0.0
  %v109 = vperm.slane %v37, 0
  %vm111 = vcmask 523264
  %v113 = vsel %vm111, %v107, 0
  %115 = vmatpush.msra.mxu0 0.0
  %116 = vmatpush.msra.mxu0 0.0
  %117 = vmatpush.msra.mxu0 0.0
  %118 = vmatpush.msra.mxu0 0.0
  %119 = vmatpush.msra.mxu0 0.0
  %120 = vmatpush.msra.mxu0 0.0
  %121 = vmatpush.msra.mxu0 0.0
  %122 = vmatpush.msra.mxu0 0.0
  %123 = vmatpush.msra.mxu0 %v36
  %124 = vmatpush.msra.mxu0 %v35
  %125 = vmatpush.msra.mxu0 %v34
  %126 = vmatpush.msra.mxu0 %v33
  %127 = vmatpush.msra.mxu0 %v32
  %128 = vmatpush.msra.mxu0 %v31
  %129 = vmatpush.msra.mxu0 %v30
  %130 = vmatpush.msra.mxu0 %v29
  %131 = vmatmul.f32.gmra.mxu0 %v113
  %v132 = vpop.f32.mrf.mxu0
  %v133 = vadd.f32 %v109, %v132
  %134 = vdwg.mxu0
  %v135 = vxor.u32 %v133, 2147483648
  %v136 = vmul.f32 %v135, 1.442695
  %v137 = vpow.pop %v136
  %v138 = vadd.f32 %v137, 1.0
  %v139 = vrcp.pop %v138
  %v140 = vmul.f32 %v138, %v139
  %v141 = vsub.f32 1.0, %v140
  %v142 = vmul.f32 %v139, %v141
  %v143 = vadd.f32 %v139, %v142
  %vm144 = vweird.f32 %v138
  %vm145 = vweird.f32 %v139
  %vm146 = vmor %vm144, %vm145
  %v147 = vsel %vm146, %v139, %v143
  %v148 = vand.u32 2147483647, %v138
  %vm149 = vcmp.eq.f32.partialorder %v148, 8.507059e+37
  %v150 = vand.u32 %v138, 2147483648
  %v151 = vor.u32 1.1754944e-38, %v150
  %v152 = vsel %vm149, %v151, %v147
  %v153 = vmul.f32 1.0, %v152
  %v154 = vtanh.pop %v133
  %v155 = vmul.f32 %v153, 0.0
  %157 = vrot.lane.b32.xlu0 %v154, 64
  %v158 = vpop.permute.xlu0 %157
  %v160 = vmul.f32 %v153, %v158
  %162 = vrot.lane.b32.xlu0 %v160, 32
  %v163 = vpop.permute.xlu0 %162
  %v165 = vadd.f32 %v155, %v163
  %v166 = vtanh.pop %v165
  %168 = vrot.lane.b32.xlu0 %v166, 64
  %v169 = vpop.permute.xlu0 %168
  %v171 = vmul.f32 %v153, %v169
  %v172 = vmax.f32 %v171, 0.0
  %v174 = vperm.slane %v38, 0
  %175 = vrot.lane.b32.xlu0 %v174, 96
  %v176 = vpop.permute.xlu0 %175
  %v178 = vmul.f32 %v172, %v176
  %180 = vrot.lane.b32.xlu0 %v178, 32
  %v181 = vpop.permute.xlu0 %180
  %v183 = vsel %vm41, %v181, 0.0
  %184 = vadd.xlane.f32.xlu0 %v183
  %v185 = vpop.xlane.xlu0 %184
  %v187 = vperm.slane %v39, 0
  %v189 = vadd.f32 %v185, %v187
  %v190 = vmax.f32 %v189, 0.0
  %v191 = vadd.f32 %v190, 0.0
  %s192 = scalar_lea.vmem %s0, 8
  %v193 = vld [vmem:[%s192] sm:$0xff]
  %v194 = vsel %vm41, %v105, 0
  %196 = vmatpush.msra.mxu0 0.0
  %197 = vmatpush.msra.mxu0 0.0
  %198 = vmatpush.msra.mxu0 0.0
  %199 = vmatpush.msra.mxu0 0.0
  %200 = vmatpush.msra.mxu0 0.0
  %201 = vmatpush.msra.mxu0 0.0
  %202 = vmatpush.msra.mxu0 0.0
  %203 = vmatpush.msra.mxu0 0.0
  %204 = vmatpush.msra.mxu0 0.0
  %205 = vmatpush.msra.mxu0 0.0
  %206 = vmatpush.msra.mxu0 0.0
  %207 = vmatpush.msra.mxu0 0.0
  %208 = vmatpush.msra.mxu0 %v28
  %209 = vmatpush.msra.mxu0 %v27
  %210 = vmatpush.msra.mxu0 %v26
  %211 = vmatpush.msra.mxu0 %v25
  %212 = vmatmul.f32.gmra.mxu0 %v194
  %v213 = vpop.f32.mrf.mxu0
  %v214 = vadd.f32 0.0, %v213
  %215 = vdwg.mxu0
  %v216 = vadd.f32 %v193, %v214
  %v217 = vxor.u32 %v216, 2147483648
  %v218 = vmul.f32 %v217, 1.442695
  %v219 = vpow.pop %v218
  %v220 = vadd.f32 %v219, 1.0
  %v221 = vrcp.pop %v220
  %v222 = vmul.f32 %v220, %v221
  %v223 = vsub.f32 1.0, %v222
  %v224 = vmul.f32 %v221, %v223
  %v225 = vadd.f32 %v221, %v224
  %vm226 = vweird.f32 %v220
  %vm227 = vweird.f32 %v221
  %vm228 = vmor %vm226, %vm227
  %v229 = vsel %vm228, %v221, %v225
  %v230 = vand.u32 2147483647, %v220
  %vm231 = vcmp.eq.f32.partialorder %v230, 8.507059e+37
  %v232 = vand.u32 %v220, 2147483648
  %v233 = vor.u32 1.1754944e-38, %v232
  %v234 = vsel %vm231, %v233, %v229
  %v235 = vmul.f32 1.0, %v234
  %v236 = vtanh.pop %v216
  %v237 = vmul.f32 %v235, %v96
  %239 = vrot.lane.b32.xlu0 %v236, 64
  %v240 = vpop.permute.xlu0 %239
  %v242 = vmul.f32 %v235, %v240
  %244 = vrot.lane.b32.xlu0 %v242, 32
  %v245 = vpop.permute.xlu0 %244
  %v247 = vadd.f32 %v237, %v245
  %v248 = vtanh.pop %v247
  %250 = vrot.lane.b32.xlu0 %v248, 64
  %v251 = vpop.permute.xlu0 %250
  %v253 = vmul.f32 %v235, %v251
  %255 = vrot.lane.b32.xlu0 %v253, 32
  %v256 = vpop.permute.xlu0 %255
  %259 = vrot.lane.b32.xlu0 %v171, 64
  %v260 = vpop.permute.xlu0 %259
  %v262 = vsel %vm41, %v256, %v260
  %v264 = vsel %vm111, %v262, 0
  %266 = vmatpush.msra.mxu0 0.0
  %267 = vmatpush.msra.mxu0 0.0
  %268 = vmatpush.msra.mxu0 0.0
  %269 = vmatpush.msra.mxu0 0.0
  %270 = vmatpush.msra.mxu0 0.0
  %271 = vmatpush.msra.mxu0 0.0
  %272 = vmatpush.msra.mxu0 0.0
  %273 = vmatpush.msra.mxu0 0.0
  %274 = vmatpush.msra.mxu0 %v36
  %275 = vmatpush.msra.mxu0 %v35
  %276 = vmatpush.msra.mxu0 %v34
  %277 = vmatpush.msra.mxu0 %v33
  %278 = vmatpush.msra.mxu0 %v32
  %279 = vmatpush.msra.mxu0 %v31
  %280 = vmatpush.msra.mxu0 %v30
  %281 = vmatpush.msra.mxu0 %v29
  %282 = vmatmul.f32.gmra.mxu0 %v264
  %v283 = vpop.f32.mrf.mxu0
  %v284 = vadd.f32 %v109, %v283
  %285 = vdwg.mxu0
  %v286 = vxor.u32 %v284, 2147483648
  %v287 = vmul.f32 %v286, 1.442695
  %v288 = vpow.pop %v287
  %v289 = vadd.f32 %v288, 1.0
  %v290 = vrcp.pop %v289
  %v291 = vmul.f32 %v289, %v290
  %v292 = vsub.f32 1.0, %v291
  %v293 = vmul.f32 %v290, %v292
  %v294 = vadd.f32 %v290, %v293
  %vm295 = vweird.f32 %v289
  %vm296 = vweird.f32 %v290
  %vm297 = vmor %vm295, %vm296
  %v298 = vsel %vm297, %v290, %v294
  %v299 = vand.u32 2147483647, %v289
  %vm300 = vcmp.eq.f32.partialorder %v299, 8.507059e+37
  %v301 = vand.u32 %v289, 2147483648
  %v302 = vor.u32 1.1754944e-38, %v301
  %v303 = vsel %vm300, %v302, %v298
  %v304 = vmul.f32 1.0, %v303
  %v305 = vtanh.pop %v284
  %v306 = vmul.f32 %v304, %v165
  %308 = vrot.lane.b32.xlu0 %v305, 64
  %v309 = vpop.permute.xlu0 %308
  %v311 = vmul.f32 %v304, %v309
  %313 = vrot.lane.b32.xlu0 %v311, 32
  %v314 = vpop.permute.xlu0 %313
  %v316 = vadd.f32 %v306, %v314
  %v317 = vtanh.pop %v316
  %319 = vrot.lane.b32.xlu0 %v317, 64
  %v320 = vpop.permute.xlu0 %319
  %v322 = vmul.f32 %v304, %v320
  %v323 = vmax.f32 %v322, 0.0
  %v324 = vmul.f32 %v323, %v176
  %326 = vrot.lane.b32.xlu0 %v324, 32
  %v327 = vpop.permute.xlu0 %326
  %v329 = vsel %vm41, %v327, 0.0
  %330 = vadd.xlane.f32.xlu0 %v329
  %v331 = vpop.xlane.xlu0 %330
  %v332 = vadd.f32 %v331, %v187
  %v333 = vmax.f32 %v332, 0.0
  %v334 = vadd.f32 %v191, %v333
  %s335 = scalar_lea.vmem %s0, 16
  %v336 = vld [vmem:[%s335] sm:$0xff]
  %v337 = vsel %vm41, %v256, 0
  %339 = vmatpush.msra.mxu0 0.0
  %340 = vmatpush.msra.mxu0 0.0
  %341 = vmatpush.msra.mxu0 0.0
  %342 = vmatpush.msra.mxu0 0.0
  %343 = vmatpush.msra.mxu0 0.0
  %344 = vmatpush.msra.mxu0 0.0
  %345 = vmatpush.msra.mxu0 0.0
  %346 = vmatpush.msra.mxu0 0.0
  %347 = vmatpush.msra.mxu0 0.0
  %348 = vmatpush.msra.mxu0 0.0
  %349 = vmatpush.msra.mxu0 0.0
  %350 = vmatpush.msra.mxu0 0.0
  %351 = vmatpush.msra.mxu0 %v28
  %352 = vmatpush.msra.mxu0 %v27
  %353 = vmatpush.msra.mxu0 %v26
  %354 = vmatpush.msra.mxu0 %v25
  %355 = vmatmul.f32.gmra.mxu0 %v337
  %v356 = vpop.f32.mrf.mxu0
  %v357 = vadd.f32 0.0, %v356
  %358 = vdwg.mxu0
  %v359 = vadd.f32 %v336, %v357
  %v360 = vxor.u32 %v359, 2147483648
  %v361 = vmul.f32 %v360, 1.442695
  %v362 = vpow.pop %v361
  %v363 = vadd.f32 %v362, 1.0
  %v364 = vrcp.pop %v363
  %v365 = vmul.f32 %v363, %v364
  %v366 = vsub.f32 1.0, %v365
  %v367 = vmul.f32 %v364, %v366
  %v368 = vadd.f32 %v364, %v367
  %vm369 = vweird.f32 %v363
  %vm370 = vweird.f32 %v364
  %vm371 = vmor %vm369, %vm370
  %v372 = vsel %vm371, %v364, %v368
  %v373 = vand.u32 2147483647, %v363
  %vm374 = vcmp.eq.f32.partialorder %v373, 8.507059e+37
  %v375 = vand.u32 %v363, 2147483648
  %v376 = vor.u32 1.1754944e-38, %v375
  %v377 = vsel %vm374, %v376, %v372
  %v378 = vmul.f32 1.0, %v377
  %v379 = vtanh.pop %v359
  %v380 = vmul.f32 %v378, %v247
  %382 = vrot.lane.b32.xlu0 %v379, 64
  %v383 = vpop.permute.xlu0 %382
  %v385 = vmul.f32 %v378, %v383
  %387 = vrot.lane.b32.xlu0 %v385, 32
  %v388 = vpop.permute.xlu0 %387
  %v390 = vadd.f32 %v380, %v388
  %v391 = vtanh.pop %v390
  %393 = vrot.lane.b32.xlu0 %v391, 64
  %v394 = vpop.permute.xlu0 %393
  %v396 = vmul.f32 %v378, %v394
  %398 = vrot.lane.b32.xlu0 %v396, 32
  %v399 = vpop.permute.xlu0 %398
  %402 = vrot.lane.b32.xlu0 %v322, 64
  %v403 = vpop.permute.xlu0 %402
  %v405 = vsel %vm41, %v399, %v403
  %v407 = vsel %vm111, %v405, 0
  %409 = vmatpush.msra.mxu0 0.0
  %410 = vmatpush.msra.mxu0 0.0
  %411 = vmatpush.msra.mxu0 0.0
  %412 = vmatpush.msra.mxu0 0.0
  %413 = vmatpush.msra.mxu0 0.0
  %414 = vmatpush.msra.mxu0 0.0
  %415 = vmatpush.msra.mxu0 0.0
  %416 = vmatpush.msra.mxu0 0.0
  %417 = vmatpush.msra.mxu0 %v36
  %418 = vmatpush.msra.mxu0 %v35
  %419 = vmatpush.msra.mxu0 %v34
  %420 = vmatpush.msra.mxu0 %v33
  %421 = vmatpush.msra.mxu0 %v32
  %422 = vmatpush.msra.mxu0 %v31
  %423 = vmatpush.msra.mxu0 %v30
  %424 = vmatpush.msra.mxu0 %v29
  %425 = vmatmul.f32.gmra.mxu0 %v407
  %v426 = vpop.f32.mrf.mxu0
  %v427 = vadd.f32 %v109, %v426
  %428 = vdwg.mxu0
  %v429 = vxor.u32 %v427, 2147483648
  %v430 = vmul.f32 %v429, 1.442695
  %v431 = vpow.pop %v430
  %v432 = vadd.f32 %v431, 1.0
  %v433 = vrcp.pop %v432
  %v434 = vmul.f32 %v432, %v433
  %v435 = vsub.f32 1.0, %v434
  %v436 = vmul.f32 %v433, %v435
  %v437 = vadd.f32 %v433, %v436
  %vm438 = vweird.f32 %v432
  %vm439 = vweird.f32 %v433
  %vm440 = vmor %vm438, %vm439
  %v441 = vsel %vm440, %v433, %v437
  %v442 = vand.u32 2147483647, %v432
  %vm443 = vcmp.eq.f32.partialorder %v442, 8.507059e+37
  %v444 = vand.u32 %v432, 2147483648
  %v445 = vor.u32 1.1754944e-38, %v444
  %v446 = vsel %vm443, %v445, %v441
  %v447 = vmul.f32 1.0, %v446
  %v448 = vtanh.pop %v427
  %v449 = vmul.f32 %v447, %v316
  %451 = vrot.lane.b32.xlu0 %v448, 64
  %v452 = vpop.permute.xlu0 %451
  %v454 = vmul.f32 %v447, %v452
  %456 = vrot.lane.b32.xlu0 %v454, 32
  %v457 = vpop.permute.xlu0 %456
  %v459 = vadd.f32 %v449, %v457
  %v460 = vtanh.pop %v459
  %462 = vrot.lane.b32.xlu0 %v460, 64
  %v463 = vpop.permute.xlu0 %462
  %v465 = vmul.f32 %v447, %v463
  %v466 = vmax.f32 %v465, 0.0
  %v467 = vmul.f32 %v466, %v176
  %469 = vrot.lane.b32.xlu0 %v467, 32
  %v470 = vpop.permute.xlu0 %469
  %v472 = vsel %vm41, %v470, 0.0
  %473 = vadd.xlane.f32.xlu0 %v472
  %v474 = vpop.xlane.xlu0 %473
  %v475 = vadd.f32 %v474, %v187
  %v476 = vmax.f32 %v475, 0.0
  %v477 = vadd.f32 %v334, %v476
  %s478 = scalar_lea.vmem %s0, 24
  %v479 = vld [vmem:[%s478] sm:$0xff]
  %v480 = vsel %vm41, %v399, 0
  %482 = vmatpush.msra.mxu0 0.0
  %483 = vmatpush.msra.mxu0 0.0
  %484 = vmatpush.msra.mxu0 0.0
  %485 = vmatpush.msra.mxu0 0.0
  %486 = vmatpush.msra.mxu0 0.0
  %487 = vmatpush.msra.mxu0 0.0
  %488 = vmatpush.msra.mxu0 0.0
  %489 = vmatpush.msra.mxu0 0.0
  %490 = vmatpush.msra.mxu0 0.0
  %491 = vmatpush.msra.mxu0 0.0
  %492 = vmatpush.msra.mxu0 0.0
  %493 = vmatpush.msra.mxu0 0.0
  %494 = vmatpush.msra.mxu0 %v28
  %495 = vmatpush.msra.mxu0 %v27
  %496 = vmatpush.msra.mxu0 %v26
  %497 = vmatpush.msra.mxu0 %v25
  %498 = vmatmul.f32.gmra.mxu0 %v480
  %v499 = vpop.f32.mrf.mxu0
  %v500 = vadd.f32 0.0, %v499
  %501 = vdwg.mxu0
  %v502 = vadd.f32 %v479, %v500
  %v503 = vxor.u32 %v502, 2147483648
  %v504 = vmul.f32 %v503, 1.442695
  %v505 = vpow.pop %v504
  %v506 = vadd.f32 %v505, 1.0
  %v507 = vrcp.pop %v506
  %v508 = vmul.f32 %v506, %v507
  %v509 = vsub.f32 1.0, %v508
  %v510 = vmul.f32 %v507, %v509
  %v511 = vadd.f32 %v507, %v510
  %vm512 = vweird.f32 %v506
  %vm513 = vweird.f32 %v507
  %vm514 = vmor %vm512, %vm513
  %v515 = vsel %vm514, %v507, %v511
  %v516 = vand.u32 2147483647, %v506
  %vm517 = vcmp.eq.f32.partialorder %v516, 8.507059e+37
  %v518 = vand.u32 %v506, 2147483648
  %v519 = vor.u32 1.1754944e-38, %v518
  %v520 = vsel %vm517, %v519, %v515
  %v521 = vmul.f32 1.0, %v520
  %v522 = vtanh.pop %v502
  %v523 = vmul.f32 %v521, %v390
  %525 = vrot.lane.b32.xlu0 %v522, 64
  %v526 = vpop.permute.xlu0 %525
  %v528 = vmul.f32 %v521, %v526
  %530 = vrot.lane.b32.xlu0 %v528, 32
  %v531 = vpop.permute.xlu0 %530
  %v533 = vadd.f32 %v523, %v531
  %v534 = vtanh.pop %v533
  %536 = vrot.lane.b32.xlu0 %v534, 64
  %v537 = vpop.permute.xlu0 %536
  %v539 = vmul.f32 %v521, %v537
  %541 = vrot.lane.b32.xlu0 %v539, 32
  %v542 = vpop.permute.xlu0 %541
  %545 = vrot.lane.b32.xlu0 %v465, 64
  %v546 = vpop.permute.xlu0 %545
  %v548 = vsel %vm41, %v542, %v546
  %v550 = vsel %vm111, %v548, 0
  %552 = vmatpush.msra.mxu0 0.0
  %553 = vmatpush.msra.mxu0 0.0
  %554 = vmatpush.msra.mxu0 0.0
  %555 = vmatpush.msra.mxu0 0.0
  %556 = vmatpush.msra.mxu0 0.0
  %557 = vmatpush.msra.mxu0 0.0
  %558 = vmatpush.msra.mxu0 0.0
  %559 = vmatpush.msra.mxu0 0.0
  %560 = vmatpush.msra.mxu0 %v36
  %561 = vmatpush.msra.mxu0 %v35
  %562 = vmatpush.msra.mxu0 %v34
  %563 = vmatpush.msra.mxu0 %v33
  %564 = vmatpush.msra.mxu0 %v32
  %565 = vmatpush.msra.mxu0 %v31
  %566 = vmatpush.msra.mxu0 %v30
  %567 = vmatpush.msra.mxu0 %v29
  %568 = vmatmul.f32.gmra.mxu0 %v550
  %v569 = vpop.f32.mrf.mxu0
  %v570 = vadd.f32 %v109, %v569
  %571 = vdwg.mxu0
  %v572 = vxor.u32 %v570, 2147483648
  %v573 = vmul.f32 %v572, 1.442695
  %v574 = vpow.pop %v573
  %v575 = vadd.f32 %v574, 1.0
  %v576 = vrcp.pop %v575
  %v577 = vmul.f32 %v575, %v576
  %v578 = vsub.f32 1.0, %v577
  %v579 = vmul.f32 %v576, %v578
  %v580 = vadd.f32 %v576, %v579
  %vm581 = vweird.f32 %v575
  %vm582 = vweird.f32 %v576
  %vm583 = vmor %vm581, %vm582
  %v584 = vsel %vm583, %v576, %v580
  %v585 = vand.u32 2147483647, %v575
  %vm586 = vcmp.eq.f32.partialorder %v585, 8.507059e+37
  %v587 = vand.u32 %v575, 2147483648
  %v588 = vor.u32 1.1754944e-38, %v587
  %v589 = vsel %vm586, %v588, %v584
  %v590 = vmul.f32 1.0, %v589
  %v591 = vtanh.pop %v570
  %v592 = vmul.f32 %v590, %v459
  %594 = vrot.lane.b32.xlu0 %v591, 64
  %v595 = vpop.permute.xlu0 %594
  %v597 = vmul.f32 %v590, %v595
  %599 = vrot.lane.b32.xlu0 %v597, 32
  %v600 = vpop.permute.xlu0 %599
  %v602 = vadd.f32 %v592, %v600
  %v603 = vtanh.pop %v602
  %605 = vrot.lane.b32.xlu0 %v603, 64
  %v606 = vpop.permute.xlu0 %605
  %v608 = vmul.f32 %v590, %v606
  %v609 = vmax.f32 %v608, 0.0
  %v610 = vmul.f32 %v609, %v176
  %612 = vrot.lane.b32.xlu0 %v610, 32
  %v613 = vpop.permute.xlu0 %612
  %v615 = vsel %vm41, %v613, 0.0
  %616 = vadd.xlane.f32.xlu0 %v615
  %v617 = vpop.xlane.xlu0 %616
  %v618 = vadd.f32 %v617, %v187
  %v619 = vmax.f32 %v618, 0.0
  %v620 = vadd.f32 %v477, %v619
  %s621 = scalar_lea.vmem %s0, 32
  %v622 = vld [vmem:[%s621] sm:$0xff]
  %v623 = vsel %vm41, %v542, 0
  %625 = vmatpush.msra.mxu0 0.0
  %626 = vmatpush.msra.mxu0 0.0
  %627 = vmatpush.msra.mxu0 0.0
  %628 = vmatpush.msra.mxu0 0.0
  %629 = vmatpush.msra.mxu0 0.0
  %630 = vmatpush.msra.mxu0 0.0
  %631 = vmatpush.msra.mxu0 0.0
  %632 = vmatpush.msra.mxu0 0.0
  %633 = vmatpush.msra.mxu0 0.0
  %634 = vmatpush.msra.mxu0 0.0
  %635 = vmatpush.msra.mxu0 0.0
  %636 = vmatpush.msra.mxu0 0.0
  %637 = vmatpush.msra.mxu0 %v28
  %638 = vmatpush.msra.mxu0 %v27
  %639 = vmatpush.msra.mxu0 %v26
  %640 = vmatpush.msra.mxu0 %v25
  %641 = vmatmul.f32.gmra.mxu0 %v623
  %v642 = vpop.f32.mrf.mxu0
  %v643 = vadd.f32 0.0, %v642
  %644 = vdwg.mxu0
  %v645 = vadd.f32 %v622, %v643
  %v646 = vxor.u32 %v645, 2147483648
  %v647 = vmul.f32 %v646, 1.442695
  %v648 = vpow.pop %v647
  %v649 = vadd.f32 %v648, 1.0
  %v650 = vrcp.pop %v649
  %v651 = vmul.f32 %v649, %v650
  %v652 = vsub.f32 1.0, %v651
  %v653 = vmul.f32 %v650, %v652
  %v654 = vadd.f32 %v650, %v653
  %vm655 = vweird.f32 %v649
  %vm656 = vweird.f32 %v650
  %vm657 = vmor %vm655, %vm656
  %v658 = vsel %vm657, %v650, %v654
  %v659 = vand.u32 2147483647, %v649
  %vm660 = vcmp.eq.f32.partialorder %v659, 8.507059e+37
  %v661 = vand.u32 %v649, 2147483648
  %v662 = vor.u32 1.1754944e-38, %v661
  %v663 = vsel %vm660, %v662, %v658
  %v664 = vmul.f32 1.0, %v663
  %v665 = vtanh.pop %v645
  %v666 = vmul.f32 %v664, %v533
  %668 = vrot.lane.b32.xlu0 %v665, 64
  %v669 = vpop.permute.xlu0 %668
  %v671 = vmul.f32 %v664, %v669
  %673 = vrot.lane.b32.xlu0 %v671, 32
  %v674 = vpop.permute.xlu0 %673
  %v676 = vadd.f32 %v666, %v674
  %v677 = vtanh.pop %v676
  %679 = vrot.lane.b32.xlu0 %v677, 64
  %v680 = vpop.permute.xlu0 %679
  %v682 = vmul.f32 %v664, %v680
  %684 = vrot.lane.b32.xlu0 %v682, 32
  %v685 = vpop.permute.xlu0 %684
  %688 = vrot.lane.b32.xlu0 %v608, 64
  %v689 = vpop.permute.xlu0 %688
  %v691 = vsel %vm41, %v685, %v689
  %v693 = vsel %vm111, %v691, 0
  %695 = vmatpush.msra.mxu0 0.0
  %696 = vmatpush.msra.mxu0 0.0
  %697 = vmatpush.msra.mxu0 0.0
  %698 = vmatpush.msra.mxu0 0.0
  %699 = vmatpush.msra.mxu0 0.0
  %700 = vmatpush.msra.mxu0 0.0
  %701 = vmatpush.msra.mxu0 0.0
  %702 = vmatpush.msra.mxu0 0.0
  %703 = vmatpush.msra.mxu0 %v36
  %704 = vmatpush.msra.mxu0 %v35
  %705 = vmatpush.msra.mxu0 %v34
  %706 = vmatpush.msra.mxu0 %v33
  %707 = vmatpush.msra.mxu0 %v32
  %708 = vmatpush.msra.mxu0 %v31
  %709 = vmatpush.msra.mxu0 %v30
  %710 = vmatpush.msra.mxu0 %v29
  %711 = vmatmul.f32.gmra.mxu0 %v693
  %v712 = vpop.f32.mrf.mxu0
  %v713 = vadd.f32 %v109, %v712
  %714 = vdwg.mxu0
  %v715 = vxor.u32 %v713, 2147483648
  %v716 = vmul.f32 %v715, 1.442695
  %v717 = vpow.pop %v716
  %v718 = vadd.f32 %v717, 1.0
  %v719 = vrcp.pop %v718
  %v720 = vmul.f32 %v718, %v719
  %v721 = vsub.f32 1.0, %v720
  %v722 = vmul.f32 %v719, %v721
  %v723 = vadd.f32 %v719, %v722
  %vm724 = vweird.f32 %v718
  %vm725 = vweird.f32 %v719
  %vm726 = vmor %vm724, %vm725
  %v727 = vsel %vm726, %v719, %v723
  %v728 = vand.u32 2147483647, %v718
  %vm729 = vcmp.eq.f32.partialorder %v728, 8.507059e+37
  %v730 = vand.u32 %v718, 2147483648
  %v731 = vor.u32 1.1754944e-38, %v730
  %v732 = vsel %vm729, %v731, %v727
  %v733 = vmul.f32 1.0, %v732
  %v734 = vtanh.pop %v713
  %v735 = vmul.f32 %v733, %v602
  %737 = vrot.lane.b32.xlu0 %v734, 64
  %v738 = vpop.permute.xlu0 %737
  %v740 = vmul.f32 %v733, %v738
  %742 = vrot.lane.b32.xlu0 %v740, 32
  %v743 = vpop.permute.xlu0 %742
  %v745 = vadd.f32 %v735, %v743
  %v746 = vtanh.pop %v745
  %748 = vrot.lane.b32.xlu0 %v746, 64
  %v749 = vpop.permute.xlu0 %748
  %v751 = vmul.f32 %v733, %v749
  %v752 = vmax.f32 %v751, 0.0
  %v753 = vmul.f32 %v752, %v176
  %755 = vrot.lane.b32.xlu0 %v753, 32
  %v756 = vpop.permute.xlu0 %755
  %v758 = vsel %vm41, %v756, 0.0
  %759 = vadd.xlane.f32.xlu0 %v758
  %v760 = vpop.xlane.xlu0 %759
  %v761 = vadd.f32 %v760, %v187
  %v762 = vmax.f32 %v761, 0.0
  %v763 = vadd.f32 %v620, %v762
  %s764 = scalar_lea.vmem %s0, 40
  %v765 = vld [vmem:[%s764] sm:$0xff]
  %v766 = vsel %vm41, %v685, 0
  %768 = vmatpush.msra.mxu0 0.0
  %769 = vmatpush.msra.mxu0 0.0
  %770 = vmatpush.msra.mxu0 0.0
  %771 = vmatpush.msra.mxu0 0.0
  %772 = vmatpush.msra.mxu0 0.0
  %773 = vmatpush.msra.mxu0 0.0
  %774 = vmatpush.msra.mxu0 0.0
  %775 = vmatpush.msra.mxu0 0.0
  %776 = vmatpush.msra.mxu0 0.0
  %777 = vmatpush.msra.mxu0 0.0
  %778 = vmatpush.msra.mxu0 0.0
  %779 = vmatpush.msra.mxu0 0.0
  %780 = vmatpush.msra.mxu0 %v28
  %781 = vmatpush.msra.mxu0 %v27
  %782 = vmatpush.msra.mxu0 %v26
  %783 = vmatpush.msra.mxu0 %v25
  %784 = vmatmul.f32.gmra.mxu0 %v766
  %v785 = vpop.f32.mrf.mxu0
  %v786 = vadd.f32 0.0, %v785
  %787 = vdwg.mxu0
  %v788 = vadd.f32 %v765, %v786
  %v789 = vxor.u32 %v788, 2147483648
  %v790 = vmul.f32 %v789, 1.442695
  %v791 = vpow.pop %v790
  %v792 = vadd.f32 %v791, 1.0
  %v793 = vrcp.pop %v792
  %v794 = vmul.f32 %v792, %v793
  %v795 = vsub.f32 1.0, %v794
  %v796 = vmul.f32 %v793, %v795
  %v797 = vadd.f32 %v793, %v796
  %vm798 = vweird.f32 %v792
  %vm799 = vweird.f32 %v793
  %vm800 = vmor %vm798, %vm799
  %v801 = vsel %vm800, %v793, %v797
  %v802 = vand.u32 2147483647, %v792
  %vm803 = vcmp.eq.f32.partialorder %v802, 8.507059e+37
  %v804 = vand.u32 %v792, 2147483648
  %v805 = vor.u32 1.1754944e-38, %v804
  %v806 = vsel %vm803, %v805, %v801
  %v807 = vmul.f32 1.0, %v806
  %v808 = vtanh.pop %v788
  %v809 = vmul.f32 %v807, %v676
  %811 = vrot.lane.b32.xlu0 %v808, 64
  %v812 = vpop.permute.xlu0 %811
  %v814 = vmul.f32 %v807, %v812
  %816 = vrot.lane.b32.xlu0 %v814, 32
  %v817 = vpop.permute.xlu0 %816
  %v819 = vadd.f32 %v809, %v817
  %v820 = vtanh.pop %v819
  %822 = vrot.lane.b32.xlu0 %v820, 64
  %v823 = vpop.permute.xlu0 %822
  %v825 = vmul.f32 %v807, %v823
  %827 = vrot.lane.b32.xlu0 %v825, 32
  %v828 = vpop.permute.xlu0 %827
  %831 = vrot.lane.b32.xlu0 %v751, 64
  %v832 = vpop.permute.xlu0 %831
  %v834 = vsel %vm41, %v828, %v832
  %v836 = vsel %vm111, %v834, 0
  %838 = vmatpush.msra.mxu0 0.0
  %839 = vmatpush.msra.mxu0 0.0
  %840 = vmatpush.msra.mxu0 0.0
  %841 = vmatpush.msra.mxu0 0.0
  %842 = vmatpush.msra.mxu0 0.0
  %843 = vmatpush.msra.mxu0 0.0
  %844 = vmatpush.msra.mxu0 0.0
  %845 = vmatpush.msra.mxu0 0.0
  %846 = vmatpush.msra.mxu0 %v36
  %847 = vmatpush.msra.mxu0 %v35
  %848 = vmatpush.msra.mxu0 %v34
  %849 = vmatpush.msra.mxu0 %v33
  %850 = vmatpush.msra.mxu0 %v32
  %851 = vmatpush.msra.mxu0 %v31
  %852 = vmatpush.msra.mxu0 %v30
  %853 = vmatpush.msra.mxu0 %v29
  %854 = vmatmul.f32.gmra.mxu0 %v836
  %v855 = vpop.f32.mrf.mxu0
  %v856 = vadd.f32 %v109, %v855
  %857 = vdwg.mxu0
  %v858 = vxor.u32 %v856, 2147483648
  %v859 = vmul.f32 %v858, 1.442695
  %v860 = vpow.pop %v859
  %v861 = vadd.f32 %v860, 1.0
  %v862 = vrcp.pop %v861
  %v863 = vmul.f32 %v861, %v862
  %v864 = vsub.f32 1.0, %v863
  %v865 = vmul.f32 %v862, %v864
  %v866 = vadd.f32 %v862, %v865
  %vm867 = vweird.f32 %v861
  %vm868 = vweird.f32 %v862
  %vm869 = vmor %vm867, %vm868
  %v870 = vsel %vm869, %v862, %v866
  %v871 = vand.u32 2147483647, %v861
  %vm872 = vcmp.eq.f32.partialorder %v871, 8.507059e+37
  %v873 = vand.u32 %v861, 2147483648
  %v874 = vor.u32 1.1754944e-38, %v873
  %v875 = vsel %vm872, %v874, %v870
  %v876 = vmul.f32 1.0, %v875
  %v877 = vtanh.pop %v856
  %v878 = vmul.f32 %v876, %v745
  %880 = vrot.lane.b32.xlu0 %v877, 64
  %v881 = vpop.permute.xlu0 %880
  %v883 = vmul.f32 %v876, %v881
  %885 = vrot.lane.b32.xlu0 %v883, 32
  %v886 = vpop.permute.xlu0 %885
  %v888 = vadd.f32 %v878, %v886
  %v889 = vtanh.pop %v888
  %891 = vrot.lane.b32.xlu0 %v889, 64
  %v892 = vpop.permute.xlu0 %891
  %v894 = vmul.f32 %v876, %v892
  %v895 = vmax.f32 %v894, 0.0
  %v896 = vmul.f32 %v895, %v176
  %898 = vrot.lane.b32.xlu0 %v896, 32
  %v899 = vpop.permute.xlu0 %898
  %v901 = vsel %vm41, %v899, 0.0
  %902 = vadd.xlane.f32.xlu0 %v901
  %v903 = vpop.xlane.xlu0 %902
  %v904 = vadd.f32 %v903, %v187
  %v905 = vmax.f32 %v904, 0.0
  %v906 = vadd.f32 %v763, %v905
  %s907 = scalar_lea.vmem %s0, 48
  %v908 = vld [vmem:[%s907] sm:$0xff]
  %v909 = vsel %vm41, %v828, 0
  %911 = vmatpush.msra.mxu0 0.0
  %912 = vmatpush.msra.mxu0 0.0
  %913 = vmatpush.msra.mxu0 0.0
  %914 = vmatpush.msra.mxu0 0.0
  %915 = vmatpush.msra.mxu0 0.0
  %916 = vmatpush.msra.mxu0 0.0
  %917 = vmatpush.msra.mxu0 0.0
  %918 = vmatpush.msra.mxu0 0.0
  %919 = vmatpush.msra.mxu0 0.0
  %920 = vmatpush.msra.mxu0 0.0
  %921 = vmatpush.msra.mxu0 0.0
  %922 = vmatpush.msra.mxu0 0.0
  %923 = vmatpush.msra.mxu0 %v28
  %924 = vmatpush.msra.mxu0 %v27
  %925 = vmatpush.msra.mxu0 %v26
  %926 = vmatpush.msra.mxu0 %v25
  %927 = vmatmul.f32.gmra.mxu0 %v909
  %v928 = vpop.f32.mrf.mxu0
  %v929 = vadd.f32 0.0, %v928
  %930 = vdwg.mxu0
  %v931 = vadd.f32 %v908, %v929
  %v932 = vxor.u32 %v931, 2147483648
  %v933 = vmul.f32 %v932, 1.442695
  %v934 = vpow.pop %v933
  %v935 = vadd.f32 %v934, 1.0
  %v936 = vrcp.pop %v935
  %v937 = vmul.f32 %v935, %v936
  %v938 = vsub.f32 1.0, %v937
  %v939 = vmul.f32 %v936, %v938
  %v940 = vadd.f32 %v936, %v939
  %vm941 = vweird.f32 %v935
  %vm942 = vweird.f32 %v936
  %vm943 = vmor %vm941, %vm942
  %v944 = vsel %vm943, %v936, %v940
  %v945 = vand.u32 2147483647, %v935
  %vm946 = vcmp.eq.f32.partialorder %v945, 8.507059e+37
  %v947 = vand.u32 %v935, 2147483648
  %v948 = vor.u32 1.1754944e-38, %v947
  %v949 = vsel %vm946, %v948, %v944
  %v950 = vmul.f32 1.0, %v949
  %v951 = vtanh.pop %v931
  %v952 = vmul.f32 %v950, %v819
  %954 = vrot.lane.b32.xlu0 %v951, 64
  %v955 = vpop.permute.xlu0 %954
  %v957 = vmul.f32 %v950, %v955
  %959 = vrot.lane.b32.xlu0 %v957, 32
  %v960 = vpop.permute.xlu0 %959
  %v962 = vadd.f32 %v952, %v960
  %v963 = vtanh.pop %v962
  %965 = vrot.lane.b32.xlu0 %v963, 64
  %v966 = vpop.permute.xlu0 %965
  %v968 = vmul.f32 %v950, %v966
  %970 = vrot.lane.b32.xlu0 %v968, 32
  %v971 = vpop.permute.xlu0 %970
  %974 = vrot.lane.b32.xlu0 %v894, 64
  %v975 = vpop.permute.xlu0 %974
  %v977 = vsel %vm41, %v971, %v975
  %v979 = vsel %vm111, %v977, 0
  %981 = vmatpush.msra.mxu0 0.0
  %982 = vmatpush.msra.mxu0 0.0
  %983 = vmatpush.msra.mxu0 0.0
  %984 = vmatpush.msra.mxu0 0.0
  %985 = vmatpush.msra.mxu0 0.0
  %986 = vmatpush.msra.mxu0 0.0
  %987 = vmatpush.msra.mxu0 0.0
  %988 = vmatpush.msra.mxu0 0.0
  %989 = vmatpush.msra.mxu0 %v36
  %990 = vmatpush.msra.mxu0 %v35
  %991 = vmatpush.msra.mxu0 %v34
  %992 = vmatpush.msra.mxu0 %v33
  %993 = vmatpush.msra.mxu0 %v32
  %994 = vmatpush.msra.mxu0 %v31
  %995 = vmatpush.msra.mxu0 %v30
  %996 = vmatpush.msra.mxu0 %v29
  %997 = vmatmul.f32.gmra.mxu0 %v979
  %v998 = vpop.f32.mrf.mxu0
  %v999 = vadd.f32 %v109, %v998
  %1000 = vdwg.mxu0
  %v1001 = vxor.u32 %v999, 2147483648
  %v1002 = vmul.f32 %v1001, 1.442695
  %v1003 = vpow.pop %v1002
  %v1004 = vadd.f32 %v1003, 1.0
  %v1005 = vrcp.pop %v1004
  %v1006 = vmul.f32 %v1004, %v1005
  %v1007 = vsub.f32 1.0, %v1006
  %v1008 = vmul.f32 %v1005, %v1007
  %v1009 = vadd.f32 %v1005, %v1008
  %vm1010 = vweird.f32 %v1004
  %vm1011 = vweird.f32 %v1005
  %vm1012 = vmor %vm1010, %vm1011
  %v1013 = vsel %vm1012, %v1005, %v1009
  %v1014 = vand.u32 2147483647, %v1004
  %vm1015 = vcmp.eq.f32.partialorder %v1014, 8.507059e+37
  %v1016 = vand.u32 %v1004, 2147483648
  %v1017 = vor.u32 1.1754944e-38, %v1016
  %v1018 = vsel %vm1015, %v1017, %v1013
  %v1019 = vmul.f32 1.0, %v1018
  %v1020 = vtanh.pop %v999
  %v1021 = vmul.f32 %v1019, %v888
  %1023 = vrot.lane.b32.xlu0 %v1020, 64
  %v1024 = vpop.permute.xlu0 %1023
  %v1026 = vmul.f32 %v1019, %v1024
  %1028 = vrot.lane.b32.xlu0 %v1026, 32
  %v1029 = vpop.permute.xlu0 %1028
  %v1031 = vadd.f32 %v1021, %v1029
  %v1032 = vtanh.pop %v1031
  %1034 = vrot.lane.b32.xlu0 %v1032, 64
  %v1035 = vpop.permute.xlu0 %1034
  %v1037 = vmul.f32 %v1019, %v1035
  %v1038 = vmax.f32 %v1037, 0.0
  %v1039 = vmul.f32 %v1038, %v176
  %1041 = vrot.lane.b32.xlu0 %v1039, 32
  %v1042 = vpop.permute.xlu0 %1041
  %v1044 = vsel %vm41, %v1042, 0.0
  %1045 = vadd.xlane.f32.xlu0 %v1044
  %v1046 = vpop.xlane.xlu0 %1045
  %v1047 = vadd.f32 %v1046, %v187
  %v1048 = vmax.f32 %v1047, 0.0
  %v1049 = vadd.f32 %v906, %v1048
  %s1050 = scalar_lea.vmem %s0, 56
  %v1051 = vld [vmem:[%s1050] sm:$0xff]
  %v1052 = vsel %vm41, %v971, 0
  %1054 = vmatpush.msra.mxu0 0.0
  %1055 = vmatpush.msra.mxu0 0.0
  %1056 = vmatpush.msra.mxu0 0.0
  %1057 = vmatpush.msra.mxu0 0.0
  %1058 = vmatpush.msra.mxu0 0.0
  %1059 = vmatpush.msra.mxu0 0.0
  %1060 = vmatpush.msra.mxu0 0.0
  %1061 = vmatpush.msra.mxu0 0.0
  %1062 = vmatpush.msra.mxu0 0.0
  %1063 = vmatpush.msra.mxu0 0.0
  %1064 = vmatpush.msra.mxu0 0.0
  %1065 = vmatpush.msra.mxu0 0.0
  %1066 = vmatpush.msra.mxu0 %v28
  %1067 = vmatpush.msra.mxu0 %v27
  %1068 = vmatpush.msra.mxu0 %v26
  %1069 = vmatpush.msra.mxu0 %v25
  %1070 = vmatmul.f32.gmra.mxu0 %v1052
  %v1071 = vpop.f32.mrf.mxu0
  %v1072 = vadd.f32 0.0, %v1071
  %1073 = vdwg.mxu0
  %v1074 = vadd.f32 %v1051, %v1072
  %v1075 = vxor.u32 %v1074, 2147483648
  %v1076 = vmul.f32 %v1075, 1.442695
  %v1077 = vpow.pop %v1076
  %v1078 = vadd.f32 %v1077, 1.0
  %v1079 = vrcp.pop %v1078
  %v1080 = vmul.f32 %v1078, %v1079
  %v1081 = vsub.f32 1.0, %v1080
  %v1082 = vmul.f32 %v1079, %v1081
  %v1083 = vadd.f32 %v1079, %v1082
  %vm1084 = vweird.f32 %v1078
  %vm1085 = vweird.f32 %v1079
  %vm1086 = vmor %vm1084, %vm1085
  %v1087 = vsel %vm1086, %v1079, %v1083
  %v1088 = vand.u32 2147483647, %v1078
  %vm1089 = vcmp.eq.f32.partialorder %v1088, 8.507059e+37
  %v1090 = vand.u32 %v1078, 2147483648
  %v1091 = vor.u32 1.1754944e-38, %v1090
  %v1092 = vsel %vm1089, %v1091, %v1087
  %v1093 = vmul.f32 1.0, %v1092
  %v1094 = vtanh.pop %v1074
  %v1095 = vmul.f32 %v1093, %v962
  %1097 = vrot.lane.b32.xlu0 %v1094, 64
  %v1098 = vpop.permute.xlu0 %1097
  %v1100 = vmul.f32 %v1093, %v1098
  %1102 = vrot.lane.b32.xlu0 %v1100, 32
  %v1103 = vpop.permute.xlu0 %1102
  %v1105 = vadd.f32 %v1095, %v1103
  %v1106 = vtanh.pop %v1105
  %1108 = vrot.lane.b32.xlu0 %v1106, 64
  %v1109 = vpop.permute.xlu0 %1108
  %v1111 = vmul.f32 %v1093, %v1109
  %1113 = vrot.lane.b32.xlu0 %v1111, 32
  %v1114 = vpop.permute.xlu0 %1113
  %1117 = vrot.lane.b32.xlu0 %v1037, 64
  %v1118 = vpop.permute.xlu0 %1117
  %v1120 = vsel %vm41, %v1114, %v1118
  %v1122 = vsel %vm111, %v1120, 0
  %1124 = vmatpush.msra.mxu0 0.0
  %1125 = vmatpush.msra.mxu0 0.0
  %1126 = vmatpush.msra.mxu0 0.0
  %1127 = vmatpush.msra.mxu0 0.0
  %1128 = vmatpush.msra.mxu0 0.0
  %1129 = vmatpush.msra.mxu0 0.0
  %1130 = vmatpush.msra.mxu0 0.0
  %1131 = vmatpush.msra.mxu0 0.0
  %1132 = vmatpush.msra.mxu0 %v36
  %1133 = vmatpush.msra.mxu0 %v35
  %1134 = vmatpush.msra.mxu0 %v34
  %1135 = vmatpush.msra.mxu0 %v33
  %1136 = vmatpush.msra.mxu0 %v32
  %1137 = vmatpush.msra.mxu0 %v31
  %1138 = vmatpush.msra.mxu0 %v30
  %1139 = vmatpush.msra.mxu0 %v29
  %1140 = vmatmul.f32.gmra.mxu0 %v1122
  %v1141 = vpop.f32.mrf.mxu0
  %v1142 = vadd.f32 %v109, %v1141
  %1143 = vdwg.mxu0
  %v1144 = vxor.u32 %v1142, 2147483648
  %v1145 = vmul.f32 %v1144, 1.442695
  %v1146 = vpow.pop %v1145
  %v1147 = vadd.f32 %v1146, 1.0
  %v1148 = vrcp.pop %v1147
  %v1149 = vmul.f32 %v1147, %v1148
  %v1150 = vsub.f32 1.0, %v1149
  %v1151 = vmul.f32 %v1148, %v1150
  %v1152 = vadd.f32 %v1148, %v1151
  %vm1153 = vweird.f32 %v1147
  %vm1154 = vweird.f32 %v1148
  %vm1155 = vmor %vm1153, %vm1154
  %v1156 = vsel %vm1155, %v1148, %v1152
  %v1157 = vand.u32 2147483647, %v1147
  %vm1158 = vcmp.eq.f32.partialorder %v1157, 8.507059e+37
  %v1159 = vand.u32 %v1147, 2147483648
  %v1160 = vor.u32 1.1754944e-38, %v1159
  %v1161 = vsel %vm1158, %v1160, %v1156
  %v1162 = vmul.f32 1.0, %v1161
  %v1163 = vtanh.pop %v1142
  %v1164 = vmul.f32 %v1162, %v1031
  %1166 = vrot.lane.b32.xlu0 %v1163, 64
  %v1167 = vpop.permute.xlu0 %1166
  %v1169 = vmul.f32 %v1162, %v1167
  %1171 = vrot.lane.b32.xlu0 %v1169, 32
  %v1172 = vpop.permute.xlu0 %1171
  %v1174 = vadd.f32 %v1164, %v1172
  %v1175 = vtanh.pop %v1174
  %1177 = vrot.lane.b32.xlu0 %v1175, 64
  %v1178 = vpop.permute.xlu0 %1177
  %v1180 = vmul.f32 %v1162, %v1178
  %v1181 = vmax.f32 %v1180, 0.0
  %v1182 = vmul.f32 %v1181, %v176
  %1184 = vrot.lane.b32.xlu0 %v1182, 32
  %v1185 = vpop.permute.xlu0 %1184
  %v1187 = vsel %vm41, %v1185, 0.0
  %1188 = vadd.xlane.f32.xlu0 %v1187
  %v1189 = vpop.xlane.xlu0 %1188
  %v1190 = vadd.f32 %v1189, %v187
  %v1191 = vmax.f32 %v1190, 0.0
  %v1192 = vadd.f32 %v1049, %v1191
  %v1193 = vmul.f32 %v1192, 0.125
  %vm1194 = vcmask 7168
  %1195 = vst.msk [vmem:[%s6] sm:$0xff] %vm1194, %v1193
  // Predicated region
  $region26: #{lstm_model_forward.1} parent=0 // pred_check
    _
  $region27: #{lstm_model_forward.1} parent=0 // pred_check_branch
    %1197 = sbr.rel (0) target = $region29
  $region28: #{lstm_model_forward.1} parent=0 // pred_region
    _
  $region29: #{lstm_model_forward.1} parent=0 // pred_fallthru
    _
  // Predicated region
  $region30: #{lstm_model_forward.1} parent=0 // pred_check
    _
  $region31: #{lstm_model_forward.1} parent=0 // pred_check_branch
    %1199 = sbr.rel (0) target = $region33
  $region32: #{lstm_model_forward.1} parent=0 // pred_region
    _
  $region33: #{lstm_model_forward.1} parent=0 // pred_fallthru
    _

</llo_original>
